<compile_context>
chip_gen: v6e
topology: v6e:2x2x1
jax: 0.10.0
libtpu: 0.0.40
codegen_flags: <defaults>
</compile_context>

<pallas_src>
import functools
import math

import jax
import jax.numpy as jnp
from jax.experimental import pallas as pl
from jax.experimental.pallas import tpu as pltpu

_EPS = 1e-5


# ------------------------------------------------------ generation-gated sizing
def _tpu_vmem_capacity():
    try:
        info = pltpu.get_tpu_info()
        cap = getattr(info, "vmem_capacity_bytes", None)
        if cap:
            return int(cap)
    except Exception:
        pass
    return 64 * 1024 * 1024          # conservative default (v7x per-TC size)


_VMEM_CAP = _tpu_vmem_capacity()
# Leave headroom for Mosaic internal scratch; stays legal on v7x's 64 MiB.
_VMEM_LIMIT = max(32 * 1024 * 1024,
                  min(_VMEM_CAP - 28 * 1024 * 1024, 100 * 1024 * 1024))
_BIG_VMEM = _VMEM_CAP >= 96 * 1024 * 1024           # v5e / v6e (128 MiB)
_TM_PREFS = (512, 256, 128) if _BIG_VMEM else (256, 128)
_TN_PREFS = (512, 256, 128) if _BIG_VMEM else (256, 128)
_TK_PREFS = (1024, 512, 256, 128)


def _pick_tile(dim, prefs):
    """Largest preferred tile dividing `dim`; else the full extent (always legal)."""
    for t in prefs:
        if dim % t == 0:
            return t
    # TODO(synk): pad non-128-multiple dims (masked edge blocks) instead of falling
    # back to one full-extent block when `dim` is large.
    return dim


def _cparams(*sem):
    return pltpu.CompilerParams(dimension_semantics=sem,
                                vmem_limit_bytes=_VMEM_LIMIT)


# --------------------------------------------------------------------- erf probe
@functools.lru_cache(maxsize=None)
def _erf_lowers_in_kernel():
    """True if lax.erf lowers in Mosaic (lets us fuse exact GELU into the matmul)."""
    def k(x_ref, o_ref):
        o_ref[...] = jax.lax.erf(x_ref[...])
    try:
        x = jnp.zeros((8, 128), jnp.float32)
        jax.block_until_ready(
            pl.pallas_call(k, out_shape=jax.ShapeDtypeStruct((8, 128), jnp.float32))(x))
        return True
    except Exception:
        return False


# --------------------------------------------------------------- shared LN helper
def _ln_core(x, g, b):
    mean = jnp.mean(x, axis=-1, keepdims=True)
    xc = x - mean
    var = jnp.mean(xc * xc, axis=-1, keepdims=True)
    return xc * jax.lax.rsqrt(var + _EPS) * g + b


# ------------------------------------------------------------------ tiled linear
def _matmul_kernel(x_ref, w_ref, b_ref, o_ref, acc_ref, *, activation):
    k = pl.program_id(2)
    part = jnp.dot(x_ref[...].astype(jnp.bfloat16), w_ref[...].astype(jnp.bfloat16),
                   preferred_element_type=jnp.float32)

    @pl.when(k == 0)
    def _():
        acc_ref[...] = part                     # first k step: plain assign, no zero+add

    @pl.when(k > 0)
    def _():
        acc_ref[...] += part

    @pl.when(k == pl.num_programs(2) - 1)
    def _():
        y = acc_ref[...] + b_ref[...].astype(jnp.float32)
        if activation == "gelu":                # exact erf GELU fused in epilogue
            y = 0.5 * y * (1.0 + jax.lax.erf(y * (1.0 / math.sqrt(2.0))))
        o_ref[...] = y.astype(o_ref.dtype)


def linear(x, w, b, activation=None):
    """x:(M,K) @ w:(K,N) + b:(1,N); bf16 MXU operands, f32 accumulation; optional
    exact-GELU fused into the last-k epilogue."""
    M, K = x.shape
    N = w.shape[1]
    tm = _pick_tile(M, _TM_PREFS)
    tn = _pick_tile(N, _TN_PREFS)
    tk = _pick_tile(K, _TK_PREFS)

    fused_act = activation
    if activation == "gelu" and not _erf_lowers_in_kernel():
        # TODO(synk): erf has no Mosaic lowering on this jax build; apply GELU outside.
        fused_act = None

    out = pl.pallas_call(
        functools.partial(_matmul_kernel, activation=fused_act),
        out_shape=jax.ShapeDtypeStruct((M, N), x.dtype),
        grid_spec=pltpu.PrefetchScalarGridSpec(
            num_scalar_prefetch=0,
            grid=(M // tm, N // tn, K // tk),
            in_specs=[pl.BlockSpec((tm, tk), lambda i, j, k: (i, k)),
                      pl.BlockSpec((tk, tn), lambda i, j, k: (k, j)),
                      pl.BlockSpec((1, tn), lambda i, j, k: (0, j))],
            out_specs=pl.BlockSpec((tm, tn), lambda i, j, k: (i, j)),
            scratch_shapes=[pltpu.VMEM((tm, tn), jnp.float32)]),
        compiler_params=_cparams("parallel", "parallel", "arbitrary"),
    )(x, w, b)

    if activation == "gelu" and fused_act is None:
        out = jax.nn.gelu(out, approximate=False)
    return out


# --------------------------------------- matmul with fused (residual +) LN epilogue
def _matmul_add_ln_kernel(x_ref, w_ref, b_ref, res_ref, g_ref, beta_ref,
                          o_ref, acc_ref):
    k = pl.program_id(1)
    part = jnp.dot(x_ref[...].astype(jnp.bfloat16), w_ref[...].astype(jnp.bfloat16),
                   preferred_element_type=jnp.float32)

    @pl.when(k == 0)
    def _():
        acc_ref[...] = part

    @pl.when(k > 0)
    def _():
        acc_ref[...] += part

    @pl.when(k == pl.num_programs(1) - 1)
    def _():
        y = (acc_ref[...] + b_ref[...].astype(jnp.float32)
             + res_ref[...].astype(jnp.float32))
        o_ref[...] = _ln_core(y, g_ref[...], beta_ref[...]).astype(o_ref.dtype)


def _matmul_scale_ln_kernel(x_ref, w_ref, b_ref, g_ref, beta_ref,
                            o_ref, acc_ref, *, scale):
    k = pl.program_id(1)
    part = jnp.dot(x_ref[...].astype(jnp.bfloat16), w_ref[...].astype(jnp.bfloat16),
                   preferred_element_type=jnp.float32)

    @pl.when(k == 0)
    def _():
        acc_ref[...] = part

    @pl.when(k > 0)
    def _():
        acc_ref[...] += part

    @pl.when(k == pl.num_programs(1) - 1)
    def _():
        y = (acc_ref[...] + b_ref[...].astype(jnp.float32)) * scale
        o_ref[...] = _ln_core(y, g_ref[...], beta_ref[...]).astype(o_ref.dtype)


def linear_add_ln(x, w, b, residual, gamma, beta):
    """LayerNorm(residual + (x @ w + b)): add + LN fused into the matmul epilogue.
    The output (N) axis stays whole so the LN over N happens in-kernel."""
    M, K = x.shape
    N = w.shape[1]
    tm = _pick_tile(M, _TM_PREFS)
    tk = _pick_tile(K, _TK_PREFS)
    return pl.pallas_call(
        _matmul_add_ln_kernel,
        out_shape=jax.ShapeDtypeStruct((M, N), x.dtype),
        grid_spec=pltpu.PrefetchScalarGridSpec(
            num_scalar_prefetch=0,
            grid=(M // tm, K // tk),
            in_specs=[pl.BlockSpec((tm, tk), lambda i, k: (i, k)),
                      pl.BlockSpec((tk, N), lambda i, k: (k, 0)),
                      pl.BlockSpec((1, N), lambda i, k: (0, 0)),
                      pl.BlockSpec((tm, N), lambda i, k: (i, 0)),
                      pl.BlockSpec((1, N), lambda i, k: (0, 0)),
                      pl.BlockSpec((1, N), lambda i, k: (0, 0))],
            out_specs=pl.BlockSpec((tm, N), lambda i, k: (i, 0)),
            scratch_shapes=[pltpu.VMEM((tm, N), jnp.float32)]),
        compiler_params=_cparams("parallel", "arbitrary"),
    )(x, w, b, residual, gamma, beta)


def linear_scale_ln(x, w, b, scale, gamma, beta):
    """LayerNorm(scale * (x @ w + b)): implements norm2(ff + dropout(ff)) == LN(2*ff)."""
    M, K = x.shape
    N = w.shape[1]
    tm = _pick_tile(M, _TM_PREFS)
    tk = _pick_tile(K, _TK_PREFS)
    return pl.pallas_call(
        functools.partial(_matmul_scale_ln_kernel, scale=scale),
        out_shape=jax.ShapeDtypeStruct((M, N), x.dtype),
        grid_spec=pltpu.PrefetchScalarGridSpec(
            num_scalar_prefetch=0,
            grid=(M // tm, K // tk),
            in_specs=[pl.BlockSpec((tm, tk), lambda i, k: (i, k)),
                      pl.BlockSpec((tk, N), lambda i, k: (k, 0)),
                      pl.BlockSpec((1, N), lambda i, k: (0, 0)),
                      pl.BlockSpec((1, N), lambda i, k: (0, 0)),
                      pl.BlockSpec((1, N), lambda i, k: (0, 0))],
            out_specs=pl.BlockSpec((tm, N), lambda i, k: (i, 0)),
            scratch_shapes=[pltpu.VMEM((tm, N), jnp.float32)]),
        compiler_params=_cparams("parallel", "arbitrary"),
    )(x, w, b, gamma, beta)


# ------------------------------------------------------------- flash-style attention
def _flash_attn_kernel(q_ref, k_ref, v_ref, o_ref, m_ref, l_ref, acc_ref,
                       *, scale, tq, tk):
    iq = pl.program_id(1)
    ik = pl.program_id(2)

    @pl.when(ik == 0)
    def _():
        m_ref[...] = jnp.full(m_ref.shape, -jnp.inf, m_ref.dtype)
        l_ref[...] = jnp.zeros(l_ref.shape, l_ref.dtype)
        acc_ref[...] = jnp.zeros(acc_ref.shape, acc_ref.dtype)

    # Skip kv blocks entirely in the (causally masked) future of this q block.
    @pl.when(ik * tk <= iq * tq + (tq - 1))
    def _():
        q = q_ref[0].astype(jnp.bfloat16)
        kk = k_ref[0].astype(jnp.bfloat16)
        s = jax.lax.dot_general(q, kk, (((1,), (1,)), ((), ())),
                                preferred_element_type=jnp.float32) * scale
        row = iq * tq + jax.lax.broadcasted_iota(jnp.int32, s.shape, 0)
        col = ik * tk + jax.lax.broadcasted_iota(jnp.int32, s.shape, 1)
        s = jnp.where(row >= col, s, -1e30)          # finite; no NaN hazard

        m_prev = m_ref[...]
        m_new = jnp.maximum(m_prev, jnp.max(s, axis=-1, keepdims=True))
        alpha = jnp.exp(m_prev - m_new)
        p = jnp.exp(s - m_new)
        l_ref[...] = alpha * l_ref[...] + jnp.sum(p, axis=-1, keepdims=True)
        acc_ref[...] = alpha * acc_ref[...] + jnp.dot(
            p.astype(jnp.bfloat16), v_ref[0].astype(jnp.bfloat16),
            preferred_element_type=jnp.float32)
        m_ref[...] = m_new

    @pl.when(ik == pl.num_programs(2) - 1)
    def _():
        o_ref[0] = (acc_ref[...] * pl.reciprocal(l_ref[...], approx=True)
                    ).astype(o_ref.dtype)


def attention(qkv_flat, B, S, E, H, d):
    """qkv_flat: (B*S, 3E) straight from the qkv projection -> (B*S, E).

    Head split matches torch's reshape(B,S,H,3d).chunk(3,-1). Layout plumbing
    (transpose to head-major (B*H, S, d)) is done in the XLA wrapper so the kernel
    sees contiguous, lane-friendly blocks; grid = (batch*head, q-block, kv-block)."""
    qkv = qkv_flat.reshape(B, S, H, 3, d)
    qkv = jnp.transpose(qkv, (3, 0, 2, 1, 4))              # (3, B, H, S, d)
    q = qkv[0].reshape(B * H, S, d)
    k = qkv[1].reshape(B * H, S, d)
    v = qkv[2].reshape(B * H, S, d)

    tq = _pick_tile(S, (256, 128))
    tk = _pick_tile(S, (256, 128))

    out = pl.pallas_call(
        functools.partial(_flash_attn_kernel, scale=1.0 / math.sqrt(d), tq=tq, tk=tk),
        out_shape=jax.ShapeDtypeStruct((B * H, S, d), qkv_flat.dtype),
        grid_spec=pltpu.PrefetchScalarGridSpec(
            num_scalar_prefetch=0,
            grid=(B * H, S // tq, S // tk),
            in_specs=[pl.BlockSpec((1, tq, d), lambda b, i, j: (b, i, 0)),
                      pl.BlockSpec((1, tk, d), lambda b, i, j: (b, j, 0)),
                      pl.BlockSpec((1, tk, d), lambda b, i, j: (b, j, 0))],
            out_specs=pl.BlockSpec((1, tq, d), lambda b, i, j: (b, i, 0)),
            scratch_shapes=[pltpu.VMEM((tq, 1), jnp.float32),
                            pltpu.VMEM((tq, 1), jnp.float32),
                            pltpu.VMEM((tq, d), jnp.float32)]),
        compiler_params=_cparams("parallel", "parallel", "arbitrary"),
    )(q, k, v)

    # bnqk,bknd->bqnd then reshape(B, S, H*d)
    return out.reshape(B, H, S, d).transpose(0, 2, 1, 3).reshape(B * S, E)


# ---------------------------------- fused tail: LN -> LM head (V-tiled) -> softmax
def _tail_kernel(x_ref, g_ref, b_ref, w_ref, wb_ref, o_ref,
                 h_ref, m_ref, l_ref, inv_ref):
    p = pl.program_id(1)             # pass 0: online max/sum stats; pass 1: write probs
    j = pl.program_id(2)

    @pl.when((p == 0) & (j == 0))
    def _():
        h = _ln_core(x_ref[...].astype(jnp.float32), g_ref[...], b_ref[...])
        h_ref[...] = h.astype(h_ref.dtype)
        m_ref[...] = jnp.full(m_ref.shape, -jnp.inf, m_ref.dtype)
        l_ref[...] = jnp.zeros(l_ref.shape, l_ref.dtype)

    logits = jnp.dot(h_ref[...], w_ref[...].astype(jnp.bfloat16),
                     preferred_element_type=jnp.float32)
    logits = logits + wb_ref[...].astype(jnp.float32)

    @pl.when(p == 0)
    def _():
        m_new = jnp.maximum(m_ref[...], jnp.max(logits, axis=-1, keepdims=True))
        alpha = jnp.exp(m_ref[...] - m_new)
        e = jnp.exp(logits - m_new)
        l_ref[...] = alpha * l_ref[...] + jnp.sum(e, axis=-1, keepdims=True)
        m_ref[...] = m_new
        o_ref[...] = e.astype(o_ref.dtype)      # placeholder; overwritten in pass 1

    @pl.when((p == 1) & (j == 0))
    def _():
        inv_ref[...] = 1.0 / l_ref[...]         # exact: rows sum to 1 to f32 precision

    @pl.when(p == 1)
    def _():
        o_ref[...] = (jnp.exp(logits - m_ref[...]) * inv_ref[...]).astype(o_ref.dtype)


def ln_lmhead_softmax(x, gamma, beta, w_lm, b_lm):
    """Fused final LayerNorm -> LM head -> softmax, tiled over the vocab axis.

    Two-pass online softmax keeps only per-row max/sum (and the LN'ed row tile, bf16)
    in VMEM, so the (E, V) weight is streamed tile-by-tile and never resident."""
    M, E = x.shape
    V = w_lm.shape[1]
    tm = _pick_tile(M, _TM_PREFS)
    tv = _pick_tile(V, (1024, 512, 256, 128))

    return pl.pallas_call(
        _tail_kernel,
        out_shape=jax.ShapeDtypeStruct((M, V), x.dtype),
        grid_spec=pltpu.PrefetchScalarGridSpec(
            num_scalar_prefetch=0,
            grid=(M // tm, 2, V // tv),
            in_specs=[pl.BlockSpec((tm, E), lambda i, p, j: (i, 0)),
                      pl.BlockSpec((1, E), lambda i, p, j: (0, 0)),
                      pl.BlockSpec((1, E), lambda i, p, j: (0, 0)),
                      pl.BlockSpec((E, tv), lambda i, p, j: (0, j)),
                      pl.BlockSpec((1, tv), lambda i, p, j: (0, j))],
            out_specs=pl.BlockSpec((tm, tv), lambda i, p, j: (i, j)),
            scratch_shapes=[pltpu.VMEM((tm, E), jnp.bfloat16),
                            pltpu.VMEM((tm, 1), jnp.float32),
                            pltpu.VMEM((tm, 1), jnp.float32),
                            pltpu.VMEM((tm, 1), jnp.float32)]),
        compiler_params=_cparams("parallel", "arbitrary", "arbitrary"),
    )(x, gamma, beta, w_lm, b_lm)


# ---------------------------------------------------------------- model (JAX glue)
def gpt_block(p, wb, x_flat, B, S, E, H, d):
    # multi-head attention: qkv proj -> flash attention -> out_proj (+residual+LN fused)
    qkv = linear(x_flat, wb["w_qkv"], p["b_qkv"])                     # (B*S, 3E)
    attn = attention(qkv, B, S, E, H, d)                              # (B*S, E)
    h = linear_add_ln(attn, wb["w_out"], p["b_out"],
                      x_flat, p["ln1_g"], p["ln1_b"])                 # norm1(X + attn)

    # feed-forward: exact-erf GELU fused into ff1 epilogue, LN(2*ff) fused into ff2
    ff = linear(h, wb["w_ff1"], p["b_ff1"], activation="gelu")
    out = linear_scale_ln(ff, wb["w_ff2"], p["b_ff2"], 2.0,
                          p["ln2_g"], p["ln2_b"])                     # norm2(ff + dropout(ff))
    return out


def gpt_forward(p, cfg, tokens):
    B, S = tokens.shape
    E, H, L, V = cfg["embed_dim"], cfg["num_heads"], cfg["num_layers"], cfg["vocab_size"]
    d = E // H

    # bf16 weight copies made once per forward (outside the layer loop): native-rate
    # MXU matmuls and halved weight HBM traffic; accumulation stays f32 in-kernel.
    wb = {k: p[k].astype(jnp.bfloat16)
          for k in ("w_qkv", "w_out", "w_ff1", "w_ff2", "w_lm")}

    x = p["tok_emb"][tokens] + p["pos_emb"][:, :S, :]                 # (B, S, E)
    out = x.reshape(B * S, E)

    # TODO(synk): keep the shared block's bf16 weights VMEM-resident across the L
    # iterations (one emit_pipeline-driven per-layer kernel / cross-call prefetch);
    # kept as separate tiled calls here for robustness.
    for _ in range(L):                                                # SAME shared block
        out = gpt_block(p, wb, out, B, S, E, H, d)

    probs = ln_lmhead_softmax(out, p["ln_f_g"], p["ln_f_b"], wb["w_lm"], p["b_lm"])
    return probs.reshape(B, S, V)


def init_params(key, cfg):
    V, E, R, M = cfg["vocab_size"], cfg["embed_dim"], cfg["ff_ratio"], cfg["max_len"]
    ks = jax.random.split(key, 8)
    nrm = lambda k, s: (0.02 * jax.random.normal(k, s, jnp.float32))
    return {
        "tok_emb": nrm(ks[0], (V, E)),
        "pos_emb": jnp.zeros((1, M, E), jnp.float32),     # nn.Parameter, left at zeros
        "w_qkv": nrm(ks[1], (E, 3 * E)), "b_qkv": jnp.zeros((1, 3 * E), jnp.float32),
        "w_out": nrm(ks[2], (E, E)),     "b_out": jnp.zeros((1, E), jnp.float32),
        "ln1_g": jnp.ones((1, E), jnp.float32), "ln1_b": jnp.zeros((1, E), jnp.float32),
        "ln2_g": jnp.ones((1, E), jnp.float32), "ln2_b": jnp.zeros((1, E), jnp.float32),
        "w_ff1": nrm(ks[3], (E, R * E)), "b_ff1": jnp.zeros((1, R * E), jnp.float32),
        "w_ff2": nrm(ks[4], (R * E, E)), "b_ff2": jnp.zeros((1, E), jnp.float32),
        "ln_f_g": jnp.ones((1, E), jnp.float32), "ln_f_b": jnp.zeros((1, E), jnp.float32),
        "w_lm": nrm(ks[5], (E, V)),      "b_lm": jnp.zeros((1, V), jnp.float32),
    }


if __name__ == "__main__":
    cfg = dict(vocab_size=32, embed_dim=32, num_layers=2, num_heads=4,
               dropout_p=0.0, ff_ratio=4, max_len=16)
    key = jax.random.PRNGKey(0)
    k_param, k_tok = jax.random.split(key)
    params = init_params(k_param, cfg)

    B, S = 2, 8
    tokens = jax.random.randint(k_tok, (B, S), 0, cfg["vocab_size"], dtype=jnp.int32)

    _erf_lowers_in_kernel()   # prime the erf-lowering probe outside of jit tracing

    fwd = jax.jit(lambda p, t: gpt_forward(p, cfg, t))
    probs = jax.block_until_ready(fwd(params, tokens))

    assert probs.shape == (B, S, cfg["vocab_size"])
    assert bool(jnp.all(jnp.abs(jnp.sum(probs, axis=-1) - 1.0) < 1e-3))
    print("KERNEL_OK")
</pallas_src>

<mosaic_0001>
module attributes {stable_mosaic.version = 11 : i64} {
  func.func @k(%arg0: memref<8x128xf32, #tpu.memory_space<vmem>>, %arg1: memref<8x128xf32, #tpu.memory_space<vmem>>) attributes {dimension_semantics = [], scalar_prefetch = 0 : i64, scratch_operands = 0 : i64, tpu.core_type = #tpu.core_type<tc>} {
    %c0 = arith.constant 0 : index
    %c0_0 = arith.constant 0 : index
    %0 = vector.load %arg0[%c0, %c0_0] : memref<8x128xf32, #tpu.memory_space<vmem>>, vector<8x128xf32>
    %1 = math.erf %0 : vector<8x128xf32>
    %c0_1 = arith.constant 0 : index
    %c0_2 = arith.constant 0 : index
    %2 = vector.load %arg1[%c0_1, %c0_2] : memref<8x128xf32, #tpu.memory_space<vmem>>, vector<8x128xf32>
    tpu.vector_store %arg1[%c0_1, %c0_2], %1 {strides = array<i32>} : memref<8x128xf32, #tpu.memory_space<vmem>>, vector<8x128xf32>,
    return
  }
}

module attributes {stable_mosaic.version = 11 : i64} {
  func.func @_matmul_kernel(%arg0: i32, %arg1: i32, %arg2: i32, %arg3: memref<16x32xf32, #tpu.memory_space<vmem>>, %arg4: memref<32x96xbf16, #tpu.memory_space<vmem>>, %arg5: memref<1x96xf32, #tpu.memory_space<vmem>>, %arg6: memref<16x96xf32, #tpu.memory_space<vmem>>, %arg7: memref<16x96xf32, #tpu.memory_space<vmem>>) attributes {dimension_semantics = [#tpu.dimension_semantics<parallel>, #tpu.dimension_semantics<parallel>, #tpu.dimension_semantics<arbitrary>], iteration_bounds = array<i64: 1, 1, 1>, scalar_prefetch = 0 : i64, scratch_operands = 1 : i64, tpu.core_type = #tpu.core_type<tc>, window_params = [{transform_indices = @transform_0, window_bounds = array<i64: 16, 32>}, {transform_indices = @transform_1, window_bounds = array<i64: 32, 96>}, {transform_indices = @transform_2, window_bounds = array<i64: 1, 96>}, {transform_indices = @transform_3, window_bounds = array<i64: 16, 96>}]} {
    %c0 = arith.constant 0 : index
    %c0_0 = arith.constant 0 : index
    %0 = vector.load %arg3[%c0, %c0_0] : memref<16x32xf32, #tpu.memory_space<vmem>>, vector<16x32xf32>
    %1 = arith.truncf %0 : vector<16x32xf32> to vector<16x32xbf16>
    %c0_1 = arith.constant 0 : index
    %c0_2 = arith.constant 0 : index
    %2 = vector.load %arg4[%c0_1, %c0_2] : memref<32x96xbf16, #tpu.memory_space<vmem>>, vector<32x96xbf16>
    %cst = arith.constant dense<0.000000e+00> : vector<16x96xf32>
    %3 = tpu.matmul %1, %2, %cst {dimension_numbers = #tpu.dot_dimension_numbers<[1], [0], [0], [1], [0, 0, 1, 1], [], []>} : vector<16x32xbf16>, vector<32x96xbf16>, vector<16x96xf32> -> vector<16x96xf32>
    %c0_i32 = arith.constant 0 : i32
    %4 = arith.cmpi eq, %arg2, %c0_i32 : i32
    %5 = arith.extui %4 : i1 to i32
    %c0_i32_3 = arith.constant 0 : i32
    %6 = arith.cmpi ne, %5, %c0_i32_3 : i32
    scf.if %6 {
      %c0_8 = arith.constant 0 : index
      %c0_9 = arith.constant 0 : index
      %13 = vector.load %arg7[%c0_8, %c0_9] : memref<16x96xf32, #tpu.memory_space<vmem>>, vector<16x96xf32>
      tpu.vector_store %arg7[%c0_8, %c0_9], %3 {strides = array<i32>} : memref<16x96xf32, #tpu.memory_space<vmem>>, vector<16x96xf32>,
    } else {
    }
    %c0_i32_4 = arith.constant 0 : i32
    %7 = arith.cmpi sgt, %arg2, %c0_i32_4 : i32
    %8 = arith.extui %7 : i1 to i32
    %c0_i32_5 = arith.constant 0 : i32
    %9 = arith.cmpi ne, %8, %c0_i32_5 : i32
    scf.if %9 {
      %c0_8 = arith.constant 0 : index
      %c0_9 = arith.constant 0 : index
      %13 = vector.load %arg7[%c0_8, %c0_9] : memref<16x96xf32, #tpu.memory_space<vmem>>, vector<16x96xf32>
      %14 = arith.addf %13, %3 : vector<16x96xf32>
      %c0_10 = arith.constant 0 : index
      %c0_11 = arith.constant 0 : index
      %15 = vector.load %arg7[%c0_10, %c0_11] : memref<16x96xf32, #tpu.memory_space<vmem>>, vector<16x96xf32>
      tpu.vector_store %arg7[%c0_10, %c0_11], %14 {strides = array<i32>} : memref<16x96xf32, #tpu.memory_space<vmem>>, vector<16x96xf32>,
    } else {
    }
    %c0_i32_6 = arith.constant 0 : i32
    %10 = arith.cmpi eq, %arg2, %c0_i32_6 : i32
    %11 = arith.extui %10 : i1 to i32
    %c0_i32_7 = arith.constant 0 : i32
    %12 = arith.cmpi ne, %11, %c0_i32_7 : i32
    scf.if %12 {
      %c0_8 = arith.constant 0 : index
      %c0_9 = arith.constant 0 : index
      %13 = vector.load %arg7[%c0_8, %c0_9] : memref<16x96xf32, #tpu.memory_space<vmem>>, vector<16x96xf32>
      %c0_10 = arith.constant 0 : index
      %c0_11 = arith.constant 0 : index
      %14 = vector.load %arg5[%c0_10, %c0_11] : memref<1x96xf32, #tpu.memory_space<vmem>>, vector<1x96xf32>
      %15 = vector.broadcast %14 : vector<1x96xf32> to vector<16x96xf32>
      %16 = arith.addf %13, %15 : vector<16x96xf32>
      %c0_12 = arith.constant 0 : index
      %c0_13 = arith.constant 0 : index
      %17 = vector.load %arg6[%c0_12, %c0_13] : memref<16x96xf32, #tpu.memory_space<vmem>>, vector<16x96xf32>
      tpu.vector_store %arg6[%c0_12, %c0_13], %16 {strides = array<i32>} : memref<16x96xf32, #tpu.memory_space<vmem>>, vector<16x96xf32>,
    } else {
    }
    return
  }
  func.func @transform_0(%arg0: i32, %arg1: i32, %arg2: i32) -> (i32, i32) {
    %c0_i32 = arith.constant 0 : i32
    return %arg0, %arg2 : i32, i32
  }
  func.func @transform_1(%arg0: i32, %arg1: i32, %arg2: i32) -> (i32, i32) {
    %c0_i32 = arith.constant 0 : i32
    return %arg2, %arg1 : i32, i32
  }
  func.func @transform_2(%arg0: i32, %arg1: i32, %arg2: i32) -> (i32, i32) {
    %c0_i32 = arith.constant 0 : i32
    %c0_i32_0 = arith.constant 0 : i32
    return %c0_i32, %arg1 : i32, i32
  }
  func.func @transform_3(%arg0: i32, %arg1: i32, %arg2: i32) -> (i32, i32) {
    %c0_i32 = arith.constant 0 : i32
    return %arg0, %arg1 : i32, i32
  }
}

module attributes {stable_mosaic.version = 11 : i64} {
  func.func @_flash_attn_kernel(%arg0: i32, %arg1: i32, %arg2: i32, %arg3: memref<1x8x8xf32, #tpu.memory_space<vmem>>, %arg4: memref<1x8x8xf32, #tpu.memory_space<vmem>>, %arg5: memref<1x8x8xf32, #tpu.memory_space<vmem>>, %arg6: memref<1x8x8xf32, #tpu.memory_space<vmem>>, %arg7: memref<8x1xf32, #tpu.memory_space<vmem>>, %arg8: memref<8x1xf32, #tpu.memory_space<vmem>>, %arg9: memref<8x8xf32, #tpu.memory_space<vmem>>) attributes {dimension_semantics = [#tpu.dimension_semantics<parallel>, #tpu.dimension_semantics<parallel>, #tpu.dimension_semantics<arbitrary>], iteration_bounds = array<i64: 8, 1, 1>, scalar_prefetch = 0 : i64, scratch_operands = 3 : i64, tpu.core_type = #tpu.core_type<tc>, window_params = [{transform_indices = @transform_0, window_bounds = array<i64: 1, 8, 8>}, {transform_indices = @transform_1, window_bounds = array<i64: 1, 8, 8>}, {transform_indices = @transform_2, window_bounds = array<i64: 1, 8, 8>}, {transform_indices = @transform_3, window_bounds = array<i64: 1, 8, 8>}]} {
    %c0_i32 = arith.constant 0 : i32
    %0 = arith.cmpi eq, %arg2, %c0_i32 : i32
    %1 = arith.extui %0 : i1 to i32
    %c0_i32_0 = arith.constant 0 : i32
    %2 = arith.cmpi ne, %1, %c0_i32_0 : i32
    scf.if %2 {
      %cst = arith.constant 0xFF800000 : f32
      %12 = vector.broadcast %cst : f32 to vector<8x1xf32>
      %c0 = arith.constant 0 : index
      %c0_5 = arith.constant 0 : index
      %13 = vector.load %arg7[%c0, %c0_5] : memref<8x1xf32, #tpu.memory_space<vmem>>, vector<8x1xf32>
      tpu.vector_store %arg7[%c0, %c0_5], %12 {strides = array<i32>} : memref<8x1xf32, #tpu.memory_space<vmem>>, vector<8x1xf32>,
      %cst_6 = arith.constant 0.000000e+00 : f32
      %14 = vector.broadcast %cst_6 : f32 to vector<8x1xf32>
      %c0_7 = arith.constant 0 : index
      %c0_8 = arith.constant 0 : index
      %15 = vector.load %arg8[%c0_7, %c0_8] : memref<8x1xf32, #tpu.memory_space<vmem>>, vector<8x1xf32>
      tpu.vector_store %arg8[%c0_7, %c0_8], %14 {strides = array<i32>} : memref<8x1xf32, #tpu.memory_space<vmem>>, vector<8x1xf32>,
      %cst_9 = arith.constant 0.000000e+00 : f32
      %16 = vector.broadcast %cst_9 : f32 to vector<8x8xf32>
      %c0_10 = arith.constant 0 : index
      %c0_11 = arith.constant 0 : index
      %17 = vector.load %arg9[%c0_10, %c0_11] : memref<8x8xf32, #tpu.memory_space<vmem>>, vector<8x8xf32>
      tpu.vector_store %arg9[%c0_10, %c0_11], %16 {strides = array<i32>} : memref<8x8xf32, #tpu.memory_space<vmem>>, vector<8x8xf32>,
    } else {
    }
    %c8_i32 = arith.constant 8 : i32
    %3 = arith.muli %arg2, %c8_i32 : i32
    %c8_i32_1 = arith.constant 8 : i32
    %4 = arith.muli %arg1, %c8_i32_1 : i32
    %c7_i32 = arith.constant 7 : i32
    %5 = arith.addi %4, %c7_i32 : i32
    %6 = arith.cmpi sle, %3, %5 : i32
    %7 = arith.extui %6 : i1 to i32
    %c0_i32_2 = arith.constant 0 : i32
    %8 = arith.cmpi ne, %7, %c0_i32_2 : i32
    scf.if %8 {
      %c0 = arith.constant 0 : index
      %c0_5 = arith.constant 0 : index
      %c0_6 = arith.constant 0 : index
      %12 = vector.load %arg3[%c0, %c0_5, %c0_6] : memref<1x8x8xf32, #tpu.memory_space<vmem>>, vector<1x8x8xf32>
      %13 = vector.shape_cast %12 : vector<1x8x8xf32> to vector<8x8xf32>
      %14 = arith.truncf %13 : vector<8x8xf32> to vector<8x8xbf16>
      %c0_7 = arith.constant 0 : index
      %c0_8 = arith.constant 0 : index
      %c0_9 = arith.constant 0 : index
      %15 = vector.load %arg4[%c0_7, %c0_8, %c0_9] : memref<1x8x8xf32, #tpu.memory_space<vmem>>, vector<1x8x8xf32>
      %16 = vector.shape_cast %15 : vector<1x8x8xf32> to vector<8x8xf32>
      %17 = arith.truncf %16 : vector<8x8xf32> to vector<8x8xbf16>
      %cst = arith.constant dense<0.000000e+00> : vector<8x8xf32>
      %18 = tpu.matmul %14, %17, %cst {dimension_numbers = #tpu.dot_dimension_numbers<[1], [1], [0], [0], [0, 0, 1, 0], [], []>} : vector<8x8xbf16>, vector<8x8xbf16>, vector<8x8xf32> -> vector<8x8xf32>
      %cst_10 = arith.constant 0.353553385 : f32
      %19 = vector.broadcast %cst_10 : f32 to vector<8x8xf32>
      %20 = arith.mulf %18, %19 : vector<8x8xf32>
      %c8_i32_11 = arith.constant 8 : i32
      %21 = arith.muli %arg1, %c8_i32_11 : i32
      %22 = tpu.iota {dimensions = array<i32: 0>} : vector<8x8xi32>
      %23 = vector.broadcast %21 : i32 to vector<8x8xi32>
      %24 = arith.addi %23, %22 : vector<8x8xi32>
      %c8_i32_12 = arith.constant 8 : i32
      %25 = arith.muli %arg2, %c8_i32_12 : i32
      %26 = tpu.iota {dimensions = array<i32: 1>} : vector<8x8xi32>
      %27 = vector.broadcast %25 : i32 to vector<8x8xi32>
      %28 = arith.addi %27, %26 : vector<8x8xi32>
      %29 = arith.cmpi sge, %24, %28 : vector<8x8xi32>
      %cst_13 = arith.constant -1.000000e+30 : f32
      %30 = vector.broadcast %cst_13 : f32 to vector<8x8xf32>
      %31 = arith.select %29, %20, %30 : vector<8x8xi1>, vector<8x8xf32>
      %c0_14 = arith.constant 0 : index
      %c0_15 = arith.constant 0 : index
      %32 = vector.load %arg7[%c0_14, %c0_15] : memref<8x1xf32, #tpu.memory_space<vmem>>, vector<8x1xf32>
      %cst_16 = arith.constant dense<0xFF800000> : vector<8xf32>
      %33 = vector.multi_reduction <maximumf>, %31, %cst_16 [1] : vector<8x8xf32> to vector<8xf32>
      %34 = vector.shape_cast %33 : vector<8xf32> to vector<8x1xf32>
      %35 = arith.maximumf %32, %34 : vector<8x1xf32>
      %36 = arith.subf %32, %35 : vector<8x1xf32>
      %37 = math.exp %36 : vector<8x1xf32>
      %38 = vector.broadcast %35 : vector<8x1xf32> to vector<8x8xf32>
      %39 = arith.subf %31, %38 : vector<8x8xf32>
      %40 = math.exp %39 : vector<8x8xf32>
      %c0_17 = arith.constant 0 : index
      %c0_18 = arith.constant 0 : index
      %41 = vector.load %arg8[%c0_17, %c0_18] : memref<8x1xf32, #tpu.memory_space<vmem>>, vector<8x1xf32>
      %42 = arith.mulf %37, %41 : vector<8x1xf32>
      %cst_19 = arith.constant dense<0.000000e+00> : vector<8xf32>
      %43 = vector.multi_reduction <add>, %40, %cst_19 [1] : vector<8x8xf32> to vector<8xf32>
      %44 = vector.shape_cast %43 : vector<8xf32> to vector<8x1xf32>
      %45 = arith.addf %42, %44 : vector<8x1xf32>
      %c0_20 = arith.constant 0 : index
      %c0_21 = arith.constant 0 : index
      %46 = vector.load %arg8[%c0_20, %c0_21] : memref<8x1xf32, #tpu.memory_space<vmem>>, vector<8x1xf32>
      tpu.vector_store %arg8[%c0_20, %c0_21], %45 {strides = array<i32>} : memref<8x1xf32, #tpu.memory_space<vmem>>, vector<8x1xf32>,
      %c0_22 = arith.constant 0 : index
      %c0_23 = arith.constant 0 : index
      %47 = vector.load %arg9[%c0_22, %c0_23] : memref<8x8xf32, #tpu.memory_space<vmem>>, vector<8x8xf32>
      %48 = vector.broadcast %37 : vector<8x1xf32> to vector<8x8xf32>
      %49 = arith.mulf %48, %47 : vector<8x8xf32>
      %50 = arith.truncf %40 : vector<8x8xf32> to vector<8x8xbf16>
      %c0_24 = arith.constant 0 : index
      %c0_25 = arith.constant 0 : index
      %c0_26 = arith.constant 0 : index
      %51 = vector.load %arg5[%c0_24, %c0_25, %c0_26] : memref<1x8x8xf32, #tpu.memory_space<vmem>>, vector<1x8x8xf32>
      %52 = vector.shape_cast %51 : vector<1x8x8xf32> to vector<8x8xf32>
      %53 = arith.truncf %52 : vector<8x8xf32> to vector<8x8xbf16>
      %cst_27 = arith.constant dense<0.000000e+00> : vector<8x8xf32>
      %54 = tpu.matmul %50, %53, %cst_27 {dimension_numbers = #tpu.dot_dimension_numbers<[1], [0], [0], [1], [0, 0, 1, 1], [], []>} : vector<8x8xbf16>, vector<8x8xbf16>, vector<8x8xf32> -> vector<8x8xf32>
      %55 = arith.addf %49, %54 : vector<8x8xf32>
      %c0_28 = arith.constant 0 : index
      %c0_29 = arith.constant 0 : index
      %56 = vector.load %arg9[%c0_28, %c0_29] : memref<8x8xf32, #tpu.memory_space<vmem>>, vector<8x8xf32>
      tpu.vector_store %arg9[%c0_28, %c0_29], %55 {strides = array<i32>} : memref<8x8xf32, #tpu.memory_space<vmem>>, vector<8x8xf32>,
      %c0_30 = arith.constant 0 : index
      %c0_31 = arith.constant 0 : index
      %57 = vector.load %arg7[%c0_30, %c0_31] : memref<8x1xf32, #tpu.memory_space<vmem>>, vector<8x1xf32>
      tpu.vector_store %arg7[%c0_30, %c0_31], %35 {strides = array<i32>} : memref<8x1xf32, #tpu.memory_space<vmem>>, vector<8x1xf32>,
    } else {
    }
    %c0_i32_3 = arith.constant 0 : i32
    %9 = arith.cmpi eq, %arg2, %c0_i32_3 : i32
    %10 = arith.extui %9 : i1 to i32
    %c0_i32_4 = arith.constant 0 : i32
    %11 = arith.cmpi ne, %10, %c0_i32_4 : i32
    scf.if %11 {
      %c0 = arith.constant 0 : index
      %c0_5 = arith.constant 0 : index
      %12 = vector.load %arg9[%c0, %c0_5] : memref<8x8xf32, #tpu.memory_space<vmem>>, vector<8x8xf32>
      %c0_6 = arith.constant 0 : index
      %c0_7 = arith.constant 0 : index
      %13 = vector.load %arg8[%c0_6, %c0_7] : memref<8x1xf32, #tpu.memory_space<vmem>>, vector<8x1xf32>
      %14 = tpu.reciprocal %13 {approx = true} : vector<8x1xf32> -> vector<8x1xf32>
      %15 = vector.broadcast %14 : vector<8x1xf32> to vector<8x8xf32>
      %16 = arith.mulf %12, %15 : vector<8x8xf32>
      %c0_8 = arith.constant 0 : index
      %c0_9 = arith.constant 0 : index
      %c0_10 = arith.constant 0 : index
      %17 = vector.load %arg6[%c0_8, %c0_9, %c0_10] : memref<1x8x8xf32, #tpu.memory_space<vmem>>, vector<1x8x8xf32>
      %18 = vector.shape_cast %17 : vector<1x8x8xf32> to vector<8x8xf32>
      %19 = vector.shape_cast %16 : vector<8x8xf32> to vector<1x8x8xf32>
      tpu.vector_store %arg6[%c0_8, %c0_9, %c0_10], %19 {strides = array<i32>} : memref<1x8x8xf32, #tpu.memory_space<vmem>>, vector<1x8x8xf32>,
    } else {
    }
    return
  }
  func.func @transform_0(%arg0: i32, %arg1: i32, %arg2: i32) -> (i32, i32, i32) {
    %c0_i32 = arith.constant 0 : i32
    %c0_i32_0 = arith.constant 0 : i32
    return %arg0, %arg1, %c0_i32 : i32, i32, i32
  }
  func.func @transform_1(%arg0: i32, %arg1: i32, %arg2: i32) -> (i32, i32, i32) {
    %c0_i32 = arith.constant 0 : i32
    %c0_i32_0 = arith.constant 0 : i32
    return %arg0, %arg2, %c0_i32 : i32, i32, i32
  }
  func.func @transform_2(%arg0: i32, %arg1: i32, %arg2: i32) -> (i32, i32, i32) {
    %c0_i32 = arith.constant 0 : i32
    %c0_i32_0 = arith.constant 0 : i32
    return %arg0, %arg2, %c0_i32 : i32, i32, i32
  }
  func.func @transform_3(%arg0: i32, %arg1: i32, %arg2: i32) -> (i32, i32, i32) {
    %c0_i32 = arith.constant 0 : i32
    %c0_i32_0 = arith.constant 0 : i32
    return %arg0, %arg1, %c0_i32 : i32, i32, i32
  }
}

module attributes {stable_mosaic.version = 11 : i64} {
  func.func @_matmul_kernel(%arg0: i32, %arg1: i32, %arg2: i32, %arg3: memref<16x32xf32, #tpu.memory_space<vmem>>, %arg4: memref<32x128xbf16, #tpu.memory_space<vmem>>, %arg5: memref<1x128xf32, #tpu.memory_space<vmem>>, %arg6: memref<16x128xf32, #tpu.memory_space<vmem>>, %arg7: memref<16x128xf32, #tpu.memory_space<vmem>>) attributes {dimension_semantics = [#tpu.dimension_semantics<parallel>, #tpu.dimension_semantics<parallel>, #tpu.dimension_semantics<arbitrary>], iteration_bounds = array<i64: 1, 1, 1>, scalar_prefetch = 0 : i64, scratch_operands = 1 : i64, tpu.core_type = #tpu.core_type<tc>, window_params = [{transform_indices = @transform_0, window_bounds = array<i64: 16, 32>}, {transform_indices = @transform_1, window_bounds = array<i64: 32, 128>}, {transform_indices = @transform_2, window_bounds = array<i64: 1, 128>}, {transform_indices = @transform_3, window_bounds = array<i64: 16, 128>}]} {
    %c0 = arith.constant 0 : index
    %c0_0 = arith.constant 0 : index
    %0 = vector.load %arg3[%c0, %c0_0] : memref<16x32xf32, #tpu.memory_space<vmem>>, vector<16x32xf32>
    %1 = arith.truncf %0 : vector<16x32xf32> to vector<16x32xbf16>
    %c0_1 = arith.constant 0 : index
    %c0_2 = arith.constant 0 : index
    %2 = vector.load %arg4[%c0_1, %c0_2] : memref<32x128xbf16, #tpu.memory_space<vmem>>, vector<32x128xbf16>
    %cst = arith.constant dense<0.000000e+00> : vector<16x128xf32>
    %3 = tpu.matmul %1, %2, %cst {dimension_numbers = #tpu.dot_dimension_numbers<[1], [0], [0], [1], [0, 0, 1, 1], [], []>} : vector<16x32xbf16>, vector<32x128xbf16>, vector<16x128xf32> -> vector<16x128xf32>
    %c0_i32 = arith.constant 0 : i32
    %4 = arith.cmpi eq, %arg2, %c0_i32 : i32
    %5 = arith.extui %4 : i1 to i32
    %c0_i32_3 = arith.constant 0 : i32
    %6 = arith.cmpi ne, %5, %c0_i32_3 : i32
    scf.if %6 {
      %c0_8 = arith.constant 0 : index
      %c0_9 = arith.constant 0 : index
      %13 = vector.load %arg7[%c0_8, %c0_9] : memref<16x128xf32, #tpu.memory_space<vmem>>, vector<16x128xf32>
      tpu.vector_store %arg7[%c0_8, %c0_9], %3 {strides = array<i32>} : memref<16x128xf32, #tpu.memory_space<vmem>>, vector<16x128xf32>,
    } else {
    }
    %c0_i32_4 = arith.constant 0 : i32
    %7 = arith.cmpi sgt, %arg2, %c0_i32_4 : i32
    %8 = arith.extui %7 : i1 to i32
    %c0_i32_5 = arith.constant 0 : i32
    %9 = arith.cmpi ne, %8, %c0_i32_5 : i32
    scf.if %9 {
      %c0_8 = arith.constant 0 : index
      %c0_9 = arith.constant 0 : index
      %13 = vector.load %arg7[%c0_8, %c0_9] : memref<16x128xf32, #tpu.memory_space<vmem>>, vector<16x128xf32>
      %14 = arith.addf %13, %3 : vector<16x128xf32>
      %c0_10 = arith.constant 0 : index
      %c0_11 = arith.constant 0 : index
      %15 = vector.load %arg7[%c0_10, %c0_11] : memref<16x128xf32, #tpu.memory_space<vmem>>, vector<16x128xf32>
      tpu.vector_store %arg7[%c0_10, %c0_11], %14 {strides = array<i32>} : memref<16x128xf32, #tpu.memory_space<vmem>>, vector<16x128xf32>,
    } else {
    }
    %c0_i32_6 = arith.constant 0 : i32
    %10 = arith.cmpi eq, %arg2, %c0_i32_6 : i32
    %11 = arith.extui %10 : i1 to i32
    %c0_i32_7 = arith.constant 0 : i32
    %12 = arith.cmpi ne, %11, %c0_i32_7 : i32
    scf.if %12 {
      %c0_8 = arith.constant 0 : index
      %c0_9 = arith.constant 0 : index
      %13 = vector.load %arg7[%c0_8, %c0_9] : memref<16x128xf32, #tpu.memory_space<vmem>>, vector<16x128xf32>
      %c0_10 = arith.constant 0 : index
      %c0_11 = arith.constant 0 : index
      %14 = vector.load %arg5[%c0_10, %c0_11] : memref<1x128xf32, #tpu.memory_space<vmem>>, vector<1x128xf32>
      %15 = vector.broadcast %14 : vector<1x128xf32> to vector<16x128xf32>
      %16 = arith.addf %13, %15 : vector<16x128xf32>
      %c0_12 = arith.constant 0 : index
      %c0_13 = arith.constant 0 : index
      %17 = vector.load %arg6[%c0_12, %c0_13] : memref<16x128xf32, #tpu.memory_space<vmem>>, vector<16x128xf32>
      tpu.vector_store %arg6[%c0_12, %c0_13], %16 {strides = array<i32>} : memref<16x128xf32, #tpu.memory_space<vmem>>, vector<16x128xf32>,
    } else {
    }
    return
  }
  func.func @transform_0(%arg0: i32, %arg1: i32, %arg2: i32) -> (i32, i32) {
    %c0_i32 = arith.constant 0 : i32
    return %arg0, %arg2 : i32, i32
  }
  func.func @transform_1(%arg0: i32, %arg1: i32, %arg2: i32) -> (i32, i32) {
    %c0_i32 = arith.constant 0 : i32
    return %arg2, %arg1 : i32, i32
  }
  func.func @transform_2(%arg0: i32, %arg1: i32, %arg2: i32) -> (i32, i32) {
    %c0_i32 = arith.constant 0 : i32
    %c0_i32_0 = arith.constant 0 : i32
    return %c0_i32, %arg1 : i32, i32
  }
  func.func @transform_3(%arg0: i32, %arg1: i32, %arg2: i32) -> (i32, i32) {
    %c0_i32 = arith.constant 0 : i32
    return %arg0, %arg1 : i32, i32
  }
}

module attributes {stable_mosaic.version = 11 : i64} {
  func.func @_matmul_add_ln_kernel(%arg0: i32, %arg1: i32, %arg2: memref<16x32xf32, #tpu.memory_space<vmem>>, %arg3: memref<32x32xbf16, #tpu.memory_space<vmem>>, %arg4: memref<1x32xf32, #tpu.memory_space<vmem>>, %arg5: memref<16x32xf32, #tpu.memory_space<vmem>>, %arg6: memref<1x32xf32, #tpu.memory_space<vmem>>, %arg7: memref<1x32xf32, #tpu.memory_space<vmem>>, %arg8: memref<16x32xf32, #tpu.memory_space<vmem>>, %arg9: memref<16x32xf32, #tpu.memory_space<vmem>>) attributes {dimension_semantics = [#tpu.dimension_semantics<parallel>, #tpu.dimension_semantics<arbitrary>], iteration_bounds = array<i64: 1, 1>, scalar_prefetch = 0 : i64, scratch_operands = 1 : i64, tpu.core_type = #tpu.core_type<tc>, window_params = [{transform_indices = @transform_0, window_bounds = array<i64: 16, 32>}, {transform_indices = @transform_1, window_bounds = array<i64: 32, 32>}, {pipeline_mode = #tpu.pipeline_mode<synchronous>, transform_indices = @transform_2, window_bounds = array<i64: 1, 32>}, {transform_indices = @transform_3, window_bounds = array<i64: 16, 32>}, {pipeline_mode = #tpu.pipeline_mode<synchronous>, transform_indices = @transform_4, window_bounds = array<i64: 1, 32>}, {pipeline_mode = #tpu.pipeline_mode<synchronous>, transform_indices = @transform_5, window_bounds = array<i64: 1, 32>}, {transform_indices = @transform_6, window_bounds = array<i64: 16, 32>}]} {
    %c0 = arith.constant 0 : index
    %c0_0 = arith.constant 0 : index
    %0 = vector.load %arg2[%c0, %c0_0] : memref<16x32xf32, #tpu.memory_space<vmem>>, vector<16x32xf32>
    %1 = arith.truncf %0 : vector<16x32xf32> to vector<16x32xbf16>
    %c0_1 = arith.constant 0 : index
    %c0_2 = arith.constant 0 : index
    %2 = vector.load %arg3[%c0_1, %c0_2] : memref<32x32xbf16, #tpu.memory_space<vmem>>, vector<32x32xbf16>
    %cst = arith.constant dense<0.000000e+00> : vector<16x32xf32>
    %3 = tpu.matmul %1, %2, %cst {dimension_numbers = #tpu.dot_dimension_numbers<[1], [0], [0], [1], [0, 0, 1, 1], [], []>} : vector<16x32xbf16>, vector<32x32xbf16>, vector<16x32xf32> -> vector<16x32xf32>
    %c0_i32 = arith.constant 0 : i32
    %4 = arith.cmpi eq, %arg1, %c0_i32 : i32
    %5 = arith.extui %4 : i1 to i32
    %c0_i32_3 = arith.constant 0 : i32
    %6 = arith.cmpi ne, %5, %c0_i32_3 : i32
    scf.if %6 {
      %c0_8 = arith.constant 0 : index
      %c0_9 = arith.constant 0 : index
      %13 = vector.load %arg9[%c0_8, %c0_9] : memref<16x32xf32, #tpu.memory_space<vmem>>, vector<16x32xf32>
      tpu.vector_store %arg9[%c0_8, %c0_9], %3 {strides = array<i32>} : memref<16x32xf32, #tpu.memory_space<vmem>>, vector<16x32xf32>,
    } else {
    }
    %c0_i32_4 = arith.constant 0 : i32
    %7 = arith.cmpi sgt, %arg1, %c0_i32_4 : i32
    %8 = arith.extui %7 : i1 to i32
    %c0_i32_5 = arith.constant 0 : i32
    %9 = arith.cmpi ne, %8, %c0_i32_5 : i32
    scf.if %9 {
      %c0_8 = arith.constant 0 : index
      %c0_9 = arith.constant 0 : index
      %13 = vector.load %arg9[%c0_8, %c0_9] : memref<16x32xf32, #tpu.memory_space<vmem>>, vector<16x32xf32>
      %14 = arith.addf %13, %3 : vector<16x32xf32>
      %c0_10 = arith.constant 0 : index
      %c0_11 = arith.constant 0 : index
      %15 = vector.load %arg9[%c0_10, %c0_11] : memref<16x32xf32, #tpu.memory_space<vmem>>, vector<16x32xf32>
      tpu.vector_store %arg9[%c0_10, %c0_11], %14 {strides = array<i32>} : memref<16x32xf32, #tpu.memory_space<vmem>>, vector<16x32xf32>,
    } else {
    }
    %c0_i32_6 = arith.constant 0 : i32
    %10 = arith.cmpi eq, %arg1, %c0_i32_6 : i32
    %11 = arith.extui %10 : i1 to i32
    %c0_i32_7 = arith.constant 0 : i32
    %12 = arith.cmpi ne, %11, %c0_i32_7 : i32
    scf.if %12 {
      %c0_8 = arith.constant 0 : index
      %c0_9 = arith.constant 0 : index
      %13 = vector.load %arg9[%c0_8, %c0_9] : memref<16x32xf32, #tpu.memory_space<vmem>>, vector<16x32xf32>
      %c0_10 = arith.constant 0 : index
      %c0_11 = arith.constant 0 : index
      %14 = vector.load %arg4[%c0_10, %c0_11] : memref<1x32xf32, #tpu.memory_space<vmem>>, vector<1x32xf32>
      %15 = vector.broadcast %14 : vector<1x32xf32> to vector<16x32xf32>
      %16 = arith.addf %13, %15 : vector<16x32xf32>
      %c0_12 = arith.constant 0 : index
      %c0_13 = arith.constant 0 : index
      %17 = vector.load %arg5[%c0_12, %c0_13] : memref<16x32xf32, #tpu.memory_space<vmem>>, vector<16x32xf32>
      %18 = arith.addf %16, %17 : vector<16x32xf32>
      %c0_14 = arith.constant 0 : index
      %c0_15 = arith.constant 0 : index
      %19 = vector.load %arg6[%c0_14, %c0_15] : memref<1x32xf32, #tpu.memory_space<vmem>>, vector<1x32xf32>
      %c0_16 = arith.constant 0 : index
      %c0_17 = arith.constant 0 : index
      %20 = vector.load %arg7[%c0_16, %c0_17] : memref<1x32xf32, #tpu.memory_space<vmem>>, vector<1x32xf32>
      %cst_18 = arith.constant dense<0.000000e+00> : vector<16xf32>
      %21 = vector.multi_reduction <add>, %18, %cst_18 [1] : vector<16x32xf32> to vector<16xf32>
      %22 = vector.shape_cast %21 : vector<16xf32> to vector<16x1xf32>
      %cst_19 = arith.constant 3.200000e+01 : f32
      %23 = vector.broadcast %cst_19 : f32 to vector<16x1xf32>
      %24 = arith.divf %22, %23 : vector<16x1xf32>
      %25 = vector.broadcast %24 : vector<16x1xf32> to vector<16x32xf32>
      %26 = arith.subf %18, %25 : vector<16x32xf32>
      %27 = arith.mulf %26, %26 : vector<16x32xf32>
      %cst_20 = arith.constant dense<0.000000e+00> : vector<16xf32>
      %28 = vector.multi_reduction <add>, %27, %cst_20 [1] : vector<16x32xf32> to vector<16xf32>
      %29 = vector.shape_cast %28 : vector<16xf32> to vector<16x1xf32>
      %cst_21 = arith.constant 3.200000e+01 : f32
      %30 = vector.broadcast %cst_21 : f32 to vector<16x1xf32>
      %31 = arith.divf %29, %30 : vector<16x1xf32>
      %cst_22 = arith.constant 9.99999974E-6 : f32
      %32 = vector.broadcast %cst_22 : f32 to vector<16x1xf32>
      %33 = arith.addf %31, %32 : vector<16x1xf32>
      %34 = math.rsqrt %33 : vector<16x1xf32>
      %35 = vector.broadcast %34 : vector<16x1xf32> to vector<16x32xf32>
      %36 = arith.mulf %26, %35 : vector<16x32xf32>
      %37 = vector.broadcast %19 : vector<1x32xf32> to vector<16x32xf32>
      %38 = arith.mulf %36, %37 : vector<16x32xf32>
      %39 = vector.broadcast %20 : vector<1x32xf32> to vector<16x32xf32>
      %40 = arith.addf %38, %39 : vector<16x32xf32>
      %c0_23 = arith.constant 0 : index
      %c0_24 = arith.constant 0 : index
      %41 = vector.load %arg8[%c0_23, %c0_24] : memref<16x32xf32, #tpu.memory_space<vmem>>, vector<16x32xf32>
      tpu.vector_store %arg8[%c0_23, %c0_24], %40 {strides = array<i32>} : memref<16x32xf32, #tpu.memory_space<vmem>>, vector<16x32xf32>,
    } else {
    }
    return
  }
  func.func @transform_0(%arg0: i32, %arg1: i32) -> (i32, i32) {
    %c0_i32 = arith.constant 0 : i32
    return %arg0, %arg1 : i32, i32
  }
  func.func @transform_1(%arg0: i32, %arg1: i32) -> (i32, i32) {
    %c0_i32 = arith.constant 0 : i32
    %c0_i32_0 = arith.constant 0 : i32
    return %arg1, %c0_i32 : i32, i32
  }
  func.func @transform_2(%arg0: i32, %arg1: i32) -> (i32, i32) {
    %c0_i32 = arith.constant 0 : i32
    %c0_i32_0 = arith.constant 0 : i32
    %c0_i32_1 = arith.constant 0 : i32
    return %c0_i32, %c0_i32_0 : i32, i32
  }
  func.func @transform_3(%arg0: i32, %arg1: i32) -> (i32, i32) {
    %c0_i32 = arith.constant 0 : i32
    %c0_i32_0 = arith.constant 0 : i32
    return %arg0, %c0_i32 : i32, i32
  }
  func.func @transform_4(%arg0: i32, %arg1: i32) -> (i32, i32) {
    %c0_i32 = arith.constant 0 : i32
    %c0_i32_0 = arith.constant 0 : i32
    %c0_i32_1 = arith.constant 0 : i32
    return %c0_i32, %c0_i32_0 : i32, i32
  }
  func.func @transform_5(%arg0: i32, %arg1: i32) -> (i32, i32) {
    %c0_i32 = arith.constant 0 : i32
    %c0_i32_0 = arith.constant 0 : i32
    %c0_i32_1 = arith.constant 0 : i32
    return %c0_i32, %c0_i32_0 : i32, i32
  }
  func.func @transform_6(%arg0: i32, %arg1: i32) -> (i32, i32) {
    %c0_i32 = arith.constant 0 : i32
    %c0_i32_0 = arith.constant 0 : i32
    return %arg0, %c0_i32 : i32, i32
  }
}

module attributes {stable_mosaic.version = 11 : i64} {
  func.func @_matmul_scale_ln_kernel(%arg0: i32, %arg1: i32, %arg2: memref<16x128xf32, #tpu.memory_space<vmem>>, %arg3: memref<128x32xbf16, #tpu.memory_space<vmem>>, %arg4: memref<1x32xf32, #tpu.memory_space<vmem>>, %arg5: memref<1x32xf32, #tpu.memory_space<vmem>>, %arg6: memref<1x32xf32, #tpu.memory_space<vmem>>, %arg7: memref<16x32xf32, #tpu.memory_space<vmem>>, %arg8: memref<16x32xf32, #tpu.memory_space<vmem>>) attributes {dimension_semantics = [#tpu.dimension_semantics<parallel>, #tpu.dimension_semantics<arbitrary>], iteration_bounds = array<i64: 1, 1>, scalar_prefetch = 0 : i64, scratch_operands = 1 : i64, tpu.core_type = #tpu.core_type<tc>, window_params = [{transform_indices = @transform_0, window_bounds = array<i64: 16, 128>}, {transform_indices = @transform_1, window_bounds = array<i64: 128, 32>}, {pipeline_mode = #tpu.pipeline_mode<synchronous>, transform_indices = @transform_2, window_bounds = array<i64: 1, 32>}, {pipeline_mode = #tpu.pipeline_mode<synchronous>, transform_indices = @transform_3, window_bounds = array<i64: 1, 32>}, {pipeline_mode = #tpu.pipeline_mode<synchronous>, transform_indices = @transform_4, window_bounds = array<i64: 1, 32>}, {transform_indices = @transform_5, window_bounds = array<i64: 16, 32>}]} {
    %c0 = arith.constant 0 : index
    %c0_0 = arith.constant 0 : index
    %0 = vector.load %arg2[%c0, %c0_0] : memref<16x128xf32, #tpu.memory_space<vmem>>, vector<16x128xf32>
    %1 = arith.truncf %0 : vector<16x128xf32> to vector<16x128xbf16>
    %c0_1 = arith.constant 0 : index
    %c0_2 = arith.constant 0 : index
    %2 = vector.load %arg3[%c0_1, %c0_2] : memref<128x32xbf16, #tpu.memory_space<vmem>>, vector<128x32xbf16>
    %cst = arith.constant dense<0.000000e+00> : vector<16x32xf32>
    %3 = tpu.matmul %1, %2, %cst {dimension_numbers = #tpu.dot_dimension_numbers<[1], [0], [0], [1], [0, 0, 1, 1], [], []>} : vector<16x128xbf16>, vector<128x32xbf16>, vector<16x32xf32> -> vector<16x32xf32>
    %c0_i32 = arith.constant 0 : i32
    %4 = arith.cmpi eq, %arg1, %c0_i32 : i32
    %5 = arith.extui %4 : i1 to i32
    %c0_i32_3 = arith.constant 0 : i32
    %6 = arith.cmpi ne, %5, %c0_i32_3 : i32
    scf.if %6 {
      %c0_8 = arith.constant 0 : index
      %c0_9 = arith.constant 0 : index
      %13 = vector.load %arg8[%c0_8, %c0_9] : memref<16x32xf32, #tpu.memory_space<vmem>>, vector<16x32xf32>
      tpu.vector_store %arg8[%c0_8, %c0_9], %3 {strides = array<i32>} : memref<16x32xf32, #tpu.memory_space<vmem>>, vector<16x32xf32>,
    } else {
    }
    %c0_i32_4 = arith.constant 0 : i32
    %7 = arith.cmpi sgt, %arg1, %c0_i32_4 : i32
    %8 = arith.extui %7 : i1 to i32
    %c0_i32_5 = arith.constant 0 : i32
    %9 = arith.cmpi ne, %8, %c0_i32_5 : i32
    scf.if %9 {
      %c0_8 = arith.constant 0 : index
      %c0_9 = arith.constant 0 : index
      %13 = vector.load %arg8[%c0_8, %c0_9] : memref<16x32xf32, #tpu.memory_space<vmem>>, vector<16x32xf32>
      %14 = arith.addf %13, %3 : vector<16x32xf32>
      %c0_10 = arith.constant 0 : index
      %c0_11 = arith.constant 0 : index
      %15 = vector.load %arg8[%c0_10, %c0_11] : memref<16x32xf32, #tpu.memory_space<vmem>>, vector<16x32xf32>
      tpu.vector_store %arg8[%c0_10, %c0_11], %14 {strides = array<i32>} : memref<16x32xf32, #tpu.memory_space<vmem>>, vector<16x32xf32>,
    } else {
    }
    %c0_i32_6 = arith.constant 0 : i32
    %10 = arith.cmpi eq, %arg1, %c0_i32_6 : i32
    %11 = arith.extui %10 : i1 to i32
    %c0_i32_7 = arith.constant 0 : i32
    %12 = arith.cmpi ne, %11, %c0_i32_7 : i32
    scf.if %12 {
      %c0_8 = arith.constant 0 : index
      %c0_9 = arith.constant 0 : index
      %13 = vector.load %arg8[%c0_8, %c0_9] : memref<16x32xf32, #tpu.memory_space<vmem>>, vector<16x32xf32>
      %c0_10 = arith.constant 0 : index
      %c0_11 = arith.constant 0 : index
      %14 = vector.load %arg4[%c0_10, %c0_11] : memref<1x32xf32, #tpu.memory_space<vmem>>, vector<1x32xf32>
      %15 = vector.broadcast %14 : vector<1x32xf32> to vector<16x32xf32>
      %16 = arith.addf %13, %15 : vector<16x32xf32>
      %cst_12 = arith.constant 2.000000e+00 : f32
      %17 = vector.broadcast %cst_12 : f32 to vector<16x32xf32>
      %18 = arith.mulf %16, %17 : vector<16x32xf32>
      %c0_13 = arith.constant 0 : index
      %c0_14 = arith.constant 0 : index
      %19 = vector.load %arg5[%c0_13, %c0_14] : memref<1x32xf32, #tpu.memory_space<vmem>>, vector<1x32xf32>
      %c0_15 = arith.constant 0 : index
      %c0_16 = arith.constant 0 : index
      %20 = vector.load %arg6[%c0_15, %c0_16] : memref<1x32xf32, #tpu.memory_space<vmem>>, vector<1x32xf32>
      %cst_17 = arith.constant dense<0.000000e+00> : vector<16xf32>
      %21 = vector.multi_reduction <add>, %18, %cst_17 [1] : vector<16x32xf32> to vector<16xf32>
      %22 = vector.shape_cast %21 : vector<16xf32> to vector<16x1xf32>
      %cst_18 = arith.constant 3.200000e+01 : f32
      %23 = vector.broadcast %cst_18 : f32 to vector<16x1xf32>
      %24 = arith.divf %22, %23 : vector<16x1xf32>
      %25 = vector.broadcast %24 : vector<16x1xf32> to vector<16x32xf32>
      %26 = arith.subf %18, %25 : vector<16x32xf32>
      %27 = arith.mulf %26, %26 : vector<16x32xf32>
      %cst_19 = arith.constant dense<0.000000e+00> : vector<16xf32>
      %28 = vector.multi_reduction <add>, %27, %cst_19 [1] : vector<16x32xf32> to vector<16xf32>
      %29 = vector.shape_cast %28 : vector<16xf32> to vector<16x1xf32>
      %cst_20 = arith.constant 3.200000e+01 : f32
      %30 = vector.broadcast %cst_20 : f32 to vector<16x1xf32>
      %31 = arith.divf %29, %30 : vector<16x1xf32>
      %cst_21 = arith.constant 9.99999974E-6 : f32
      %32 = vector.broadcast %cst_21 : f32 to vector<16x1xf32>
      %33 = arith.addf %31, %32 : vector<16x1xf32>
      %34 = math.rsqrt %33 : vector<16x1xf32>
      %35 = vector.broadcast %34 : vector<16x1xf32> to vector<16x32xf32>
      %36 = arith.mulf %26, %35 : vector<16x32xf32>
      %37 = vector.broadcast %19 : vector<1x32xf32> to vector<16x32xf32>
      %38 = arith.mulf %36, %37 : vector<16x32xf32>
      %39 = vector.broadcast %20 : vector<1x32xf32> to vector<16x32xf32>
      %40 = arith.addf %38, %39 : vector<16x32xf32>
      %c0_22 = arith.constant 0 : index
      %c0_23 = arith.constant 0 : index
      %41 = vector.load %arg7[%c0_22, %c0_23] : memref<16x32xf32, #tpu.memory_space<vmem>>, vector<16x32xf32>
      tpu.vector_store %arg7[%c0_22, %c0_23], %40 {strides = array<i32>} : memref<16x32xf32, #tpu.memory_space<vmem>>, vector<16x32xf32>,
    } else {
    }
    return
  }
  func.func @transform_0(%arg0: i32, %arg1: i32) -> (i32, i32) {
    %c0_i32 = arith.constant 0 : i32
    return %arg0, %arg1 : i32, i32
  }
  func.func @transform_1(%arg0: i32, %arg1: i32) -> (i32, i32) {
    %c0_i32 = arith.constant 0 : i32
    %c0_i32_0 = arith.constant 0 : i32
    return %arg1, %c0_i32 : i32, i32
  }
  func.func @transform_2(%arg0: i32, %arg1: i32) -> (i32, i32) {
    %c0_i32 = arith.constant 0 : i32
    %c0_i32_0 = arith.constant 0 : i32
    %c0_i32_1 = arith.constant 0 : i32
    return %c0_i32, %c0_i32_0 : i32, i32
  }
  func.func @transform_3(%arg0: i32, %arg1: i32) -> (i32, i32) {
    %c0_i32 = arith.constant 0 : i32
    %c0_i32_0 = arith.constant 0 : i32
    %c0_i32_1 = arith.constant 0 : i32
    return %c0_i32, %c0_i32_0 : i32, i32
  }
  func.func @transform_4(%arg0: i32, %arg1: i32) -> (i32, i32) {
    %c0_i32 = arith.constant 0 : i32
    %c0_i32_0 = arith.constant 0 : i32
    %c0_i32_1 = arith.constant 0 : i32
    return %c0_i32, %c0_i32_0 : i32, i32
  }
  func.func @transform_5(%arg0: i32, %arg1: i32) -> (i32, i32) {
    %c0_i32 = arith.constant 0 : i32
    %c0_i32_0 = arith.constant 0 : i32
    return %arg0, %c0_i32 : i32, i32
  }
}

module attributes {stable_mosaic.version = 11 : i64} {
  func.func @_tail_kernel(%arg0: i32, %arg1: i32, %arg2: i32, %arg3: memref<16x32xf32, #tpu.memory_space<vmem>>, %arg4: memref<1x32xf32, #tpu.memory_space<vmem>>, %arg5: memref<1x32xf32, #tpu.memory_space<vmem>>, %arg6: memref<32x32xbf16, #tpu.memory_space<vmem>>, %arg7: memref<1x32xf32, #tpu.memory_space<vmem>>, %arg8: memref<16x32xf32, #tpu.memory_space<vmem>>, %arg9: memref<16x32xbf16, #tpu.memory_space<vmem>>, %arg10: memref<16x1xf32, #tpu.memory_space<vmem>>, %arg11: memref<16x1xf32, #tpu.memory_space<vmem>>, %arg12: memref<16x1xf32, #tpu.memory_space<vmem>>) attributes {dimension_semantics = [#tpu.dimension_semantics<parallel>, #tpu.dimension_semantics<arbitrary>, #tpu.dimension_semantics<arbitrary>], iteration_bounds = array<i64: 1, 2, 1>, scalar_prefetch = 0 : i64, scratch_operands = 4 : i64, tpu.core_type = #tpu.core_type<tc>, window_params = [{transform_indices = @transform_0, window_bounds = array<i64: 16, 32>}, {pipeline_mode = #tpu.pipeline_mode<synchronous>, transform_indices = @transform_1, window_bounds = array<i64: 1, 32>}, {pipeline_mode = #tpu.pipeline_mode<synchronous>, transform_indices = @transform_2, window_bounds = array<i64: 1, 32>}, {transform_indices = @transform_3, window_bounds = array<i64: 32, 32>}, {transform_indices = @transform_4, window_bounds = array<i64: 1, 32>}, {transform_indices = @transform_5, window_bounds = array<i64: 16, 32>}]} {
    %c0_i32 = arith.constant 0 : i32
    %0 = arith.cmpi eq, %arg1, %c0_i32 : i32
    %c0_i32_0 = arith.constant 0 : i32
    %1 = arith.cmpi eq, %arg2, %c0_i32_0 : i32
    %2 = arith.andi %0, %1 : i1
    %3 = arith.extui %2 : i1 to i32
    %c0_i32_1 = arith.constant 0 : i32
    %4 = arith.cmpi ne, %3, %c0_i32_1 : i32
    scf.if %4 {
      %c0_13 = arith.constant 0 : index
      %c0_14 = arith.constant 0 : index
      %22 = vector.load %arg3[%c0_13, %c0_14] : memref<16x32xf32, #tpu.memory_space<vmem>>, vector<16x32xf32>
      %c0_15 = arith.constant 0 : index
      %c0_16 = arith.constant 0 : index
      %23 = vector.load %arg4[%c0_15, %c0_16] : memref<1x32xf32, #tpu.memory_space<vmem>>, vector<1x32xf32>
      %c0_17 = arith.constant 0 : index
      %c0_18 = arith.constant 0 : index
      %24 = vector.load %arg5[%c0_17, %c0_18] : memref<1x32xf32, #tpu.memory_space<vmem>>, vector<1x32xf32>
      %cst_19 = arith.constant dense<0.000000e+00> : vector<16xf32>
      %25 = vector.multi_reduction <add>, %22, %cst_19 [1] : vector<16x32xf32> to vector<16xf32>
      %26 = vector.shape_cast %25 : vector<16xf32> to vector<16x1xf32>
      %cst_20 = arith.constant 3.200000e+01 : f32
      %27 = vector.broadcast %cst_20 : f32 to vector<16x1xf32>
      %28 = arith.divf %26, %27 : vector<16x1xf32>
      %29 = vector.broadcast %28 : vector<16x1xf32> to vector<16x32xf32>
      %30 = arith.subf %22, %29 : vector<16x32xf32>
      %31 = arith.mulf %30, %30 : vector<16x32xf32>
      %cst_21 = arith.constant dense<0.000000e+00> : vector<16xf32>
      %32 = vector.multi_reduction <add>, %31, %cst_21 [1] : vector<16x32xf32> to vector<16xf32>
      %33 = vector.shape_cast %32 : vector<16xf32> to vector<16x1xf32>
      %cst_22 = arith.constant 3.200000e+01 : f32
      %34 = vector.broadcast %cst_22 : f32 to vector<16x1xf32>
      %35 = arith.divf %33, %34 : vector<16x1xf32>
      %cst_23 = arith.constant 9.99999974E-6 : f32
      %36 = vector.broadcast %cst_23 : f32 to vector<16x1xf32>
      %37 = arith.addf %35, %36 : vector<16x1xf32>
      %38 = math.rsqrt %37 : vector<16x1xf32>
      %39 = vector.broadcast %38 : vector<16x1xf32> to vector<16x32xf32>
      %40 = arith.mulf %30, %39 : vector<16x32xf32>
      %41 = vector.broadcast %23 : vector<1x32xf32> to vector<16x32xf32>
      %42 = arith.mulf %40, %41 : vector<16x32xf32>
      %43 = vector.broadcast %24 : vector<1x32xf32> to vector<16x32xf32>
      %44 = arith.addf %42, %43 : vector<16x32xf32>
      %45 = arith.truncf %44 : vector<16x32xf32> to vector<16x32xbf16>
      %c0_24 = arith.constant 0 : index
      %c0_25 = arith.constant 0 : index
      %46 = vector.load %arg9[%c0_24, %c0_25] : memref<16x32xbf16, #tpu.memory_space<vmem>>, vector<16x32xbf16>
      tpu.vector_store %arg9[%c0_24, %c0_25], %45 {strides = array<i32>} : memref<16x32xbf16, #tpu.memory_space<vmem>>, vector<16x32xbf16>,
      %cst_26 = arith.constant 0xFF800000 : f32
      %47 = vector.broadcast %cst_26 : f32 to vector<16x1xf32>
      %c0_27 = arith.constant 0 : index
      %c0_28 = arith.constant 0 : index
      %48 = vector.load %arg10[%c0_27, %c0_28] : memref<16x1xf32, #tpu.memory_space<vmem>>, vector<16x1xf32>
      tpu.vector_store %arg10[%c0_27, %c0_28], %47 {strides = array<i32>} : memref<16x1xf32, #tpu.memory_space<vmem>>, vector<16x1xf32>,
      %cst_29 = arith.constant 0.000000e+00 : f32
      %49 = vector.broadcast %cst_29 : f32 to vector<16x1xf32>
      %c0_30 = arith.constant 0 : index
      %c0_31 = arith.constant 0 : index
      %50 = vector.load %arg11[%c0_30, %c0_31] : memref<16x1xf32, #tpu.memory_space<vmem>>, vector<16x1xf32>
      tpu.vector_store %arg11[%c0_30, %c0_31], %49 {strides = array<i32>} : memref<16x1xf32, #tpu.memory_space<vmem>>, vector<16x1xf32>,
    } else {
    }
    %c0 = arith.constant 0 : index
    %c0_2 = arith.constant 0 : index
    %5 = vector.load %arg9[%c0, %c0_2] : memref<16x32xbf16, #tpu.memory_space<vmem>>, vector<16x32xbf16>
    %c0_3 = arith.constant 0 : index
    %c0_4 = arith.constant 0 : index
    %6 = vector.load %arg6[%c0_3, %c0_4] : memref<32x32xbf16, #tpu.memory_space<vmem>>, vector<32x32xbf16>
    %cst = arith.constant dense<0.000000e+00> : vector<16x32xf32>
    %7 = tpu.matmul %5, %6, %cst {dimension_numbers = #tpu.dot_dimension_numbers<[1], [0], [0], [1], [0, 0, 1, 1], [], []>} : vector<16x32xbf16>, vector<32x32xbf16>, vector<16x32xf32> -> vector<16x32xf32>
    %c0_5 = arith.constant 0 : index
    %c0_6 = arith.constant 0 : index
    %8 = vector.load %arg7[%c0_5, %c0_6] : memref<1x32xf32, #tpu.memory_space<vmem>>, vector<1x32xf32>
    %9 = vector.broadcast %8 : vector<1x32xf32> to vector<16x32xf32>
    %10 = arith.addf %7, %9 : vector<16x32xf32>
    %c0_i32_7 = arith.constant 0 : i32
    %11 = arith.cmpi eq, %arg1, %c0_i32_7 : i32
    %12 = arith.extui %11 : i1 to i32
    %c0_i32_8 = arith.constant 0 : i32
    %13 = arith.cmpi ne, %12, %c0_i32_8 : i32
    scf.if %13 {
      %c0_13 = arith.constant 0 : index
      %c0_14 = arith.constant 0 : index
      %22 = vector.load %arg10[%c0_13, %c0_14] : memref<16x1xf32, #tpu.memory_space<vmem>>, vector<16x1xf32>
      %cst_15 = arith.constant dense<0xFF800000> : vector<16xf32>
      %23 = vector.multi_reduction <maximumf>, %10, %cst_15 [1] : vector<16x32xf32> to vector<16xf32>
      %24 = vector.shape_cast %23 : vector<16xf32> to vector<16x1xf32>
      %25 = arith.maximumf %22, %24 : vector<16x1xf32>
      %c0_16 = arith.constant 0 : index
      %c0_17 = arith.constant 0 : index
      %26 = vector.load %arg10[%c0_16, %c0_17] : memref<16x1xf32, #tpu.memory_space<vmem>>, vector<16x1xf32>
      %27 = arith.subf %26, %25 : vector<16x1xf32>
      %28 = math.exp %27 : vector<16x1xf32>
      %29 = vector.broadcast %25 : vector<16x1xf32> to vector<16x32xf32>
      %30 = arith.subf %10, %29 : vector<16x32xf32>
      %31 = math.exp %30 : vector<16x32xf32>
      %c0_18 = arith.constant 0 : index
      %c0_19 = arith.constant 0 : index
      %32 = vector.load %arg11[%c0_18, %c0_19] : memref<16x1xf32, #tpu.memory_space<vmem>>, vector<16x1xf32>
      %33 = arith.mulf %28, %32 : vector<16x1xf32>
      %cst_20 = arith.constant dense<0.000000e+00> : vector<16xf32>
      %34 = vector.multi_reduction <add>, %31, %cst_20 [1] : vector<16x32xf32> to vector<16xf32>
      %35 = vector.shape_cast %34 : vector<16xf32> to vector<16x1xf32>
      %36 = arith.addf %33, %35 : vector<16x1xf32>
      %c0_21 = arith.constant 0 : index
      %c0_22 = arith.constant 0 : index
      %37 = vector.load %arg11[%c0_21, %c0_22] : memref<16x1xf32, #tpu.memory_space<vmem>>, vector<16x1xf32>
      tpu.vector_store %arg11[%c0_21, %c0_22], %36 {strides = array<i32>} : memref<16x1xf32, #tpu.memory_space<vmem>>, vector<16x1xf32>,
      %c0_23 = arith.constant 0 : index
      %c0_24 = arith.constant 0 : index
      %38 = vector.load %arg10[%c0_23, %c0_24] : memref<16x1xf32, #tpu.memory_space<vmem>>, vector<16x1xf32>
      tpu.vector_store %arg10[%c0_23, %c0_24], %25 {strides = array<i32>} : memref<16x1xf32, #tpu.memory_space<vmem>>, vector<16x1xf32>,
      %c0_25 = arith.constant 0 : index
      %c0_26 = arith.constant 0 : index
      %39 = vector.load %arg8[%c0_25, %c0_26] : memref<16x32xf32, #tpu.memory_space<vmem>>, vector<16x32xf32>
      tpu.vector_store %arg8[%c0_25, %c0_26], %31 {strides = array<i32>} : memref<16x32xf32, #tpu.memory_space<vmem>>, vector<16x32xf32>,
    } else {
    }
    %c1_i32 = arith.constant 1 : i32
    %14 = arith.cmpi eq, %arg1, %c1_i32 : i32
    %c0_i32_9 = arith.constant 0 : i32
    %15 = arith.cmpi eq, %arg2, %c0_i32_9 : i32
    %16 = arith.andi %14, %15 : i1
    %17 = arith.extui %16 : i1 to i32
    %c0_i32_10 = arith.constant 0 : i32
    %18 = arith.cmpi ne, %17, %c0_i32_10 : i32
    scf.if %18 {
      %c0_13 = arith.constant 0 : index
      %c0_14 = arith.constant 0 : index
      %22 = vector.load %arg11[%c0_13, %c0_14] : memref<16x1xf32, #tpu.memory_space<vmem>>, vector<16x1xf32>
      %cst_15 = arith.constant 1.000000e+00 : f32
      %23 = vector.broadcast %cst_15 : f32 to vector<16x1xf32>
      %24 = arith.divf %23, %22 : vector<16x1xf32>
      %c0_16 = arith.constant 0 : index
      %c0_17 = arith.constant 0 : index
      %25 = vector.load %arg12[%c0_16, %c0_17] : memref<16x1xf32, #tpu.memory_space<vmem>>, vector<16x1xf32>
      tpu.vector_store %arg12[%c0_16, %c0_17], %24 {strides = array<i32>} : memref<16x1xf32, #tpu.memory_space<vmem>>, vector<16x1xf32>,
    } else {
    }
    %c1_i32_11 = arith.constant 1 : i32
    %19 = arith.cmpi eq, %arg1, %c1_i32_11 : i32
    %20 = arith.extui %19 : i1 to i32
    %c0_i32_12 = arith.constant 0 : i32
    %21 = arith.cmpi ne, %20, %c0_i32_12 : i32
    scf.if %21 {
      %c0_13 = arith.constant 0 : index
      %c0_14 = arith.constant 0 : index
      %22 = vector.load %arg10[%c0_13, %c0_14] : memref<16x1xf32, #tpu.memory_space<vmem>>, vector<16x1xf32>
      %23 = vector.broadcast %22 : vector<16x1xf32> to vector<16x32xf32>
      %24 = arith.subf %10, %23 : vector<16x32xf32>
      %25 = math.exp %24 : vector<16x32xf32>
      %c0_15 = arith.constant 0 : index
      %c0_16 = arith.constant 0 : index
      %26 = vector.load %arg12[%c0_15, %c0_16] : memref<16x1xf32, #tpu.memory_space<vmem>>, vector<16x1xf32>
      %27 = vector.broadcast %26 : vector<16x1xf32> to vector<16x32xf32>
      %28 = arith.mulf %25, %27 : vector<16x32xf32>
      %c0_17 = arith.constant 0 : index
      %c0_18 = arith.constant 0 : index
      %29 = vector.load %arg8[%c0_17, %c0_18] : memref<16x32xf32, #tpu.memory_space<vmem>>, vector<16x32xf32>
      tpu.vector_store %arg8[%c0_17, %c0_18], %28 {strides = array<i32>} : memref<16x32xf32, #tpu.memory_space<vmem>>, vector<16x32xf32>,
    } else {
    }
    return
  }
  func.func @transform_0(%arg0: i32, %arg1: i32, %arg2: i32) -> (i32, i32) {
    %c0_i32 = arith.constant 0 : i32
    %c0_i32_0 = arith.constant 0 : i32
    return %arg0, %c0_i32 : i32, i32
  }
  func.func @transform_1(%arg0: i32, %arg1: i32, %arg2: i32) -> (i32, i32) {
    %c0_i32 = arith.constant 0 : i32
    %c0_i32_0 = arith.constant 0 : i32
    %c0_i32_1 = arith.constant 0 : i32
    return %c0_i32, %c0_i32_0 : i32, i32
  }
  func.func @transform_2(%arg0: i32, %arg1: i32, %arg2: i32) -> (i32, i32) {
    %c0_i32 = arith.constant 0 : i32
    %c0_i32_0 = arith.constant 0 : i32
    %c0_i32_1 = arith.constant 0 : i32
    return %c0_i32, %c0_i32_0 : i32, i32
  }
  func.func @transform_3(%arg0: i32, %arg1: i32, %arg2: i32) -> (i32, i32) {
    %c0_i32 = arith.constant 0 : i32
    %c0_i32_0 = arith.constant 0 : i32
    return %c0_i32, %arg2 : i32, i32
  }
  func.func @transform_4(%arg0: i32, %arg1: i32, %arg2: i32) -> (i32, i32) {
    %c0_i32 = arith.constant 0 : i32
    %c0_i32_0 = arith.constant 0 : i32
    return %c0_i32, %arg2 : i32, i32
  }
  func.func @transform_5(%arg0: i32, %arg1: i32, %arg2: i32) -> (i32, i32) {
    %c0_i32 = arith.constant 0 : i32
    return %arg0, %arg2 : i32, i32
  }
}

</mosaic_0001>

<llo_original>
// kernel: tpu_custom_call.1
$region0: #{tpu_custom_call.1}
  #allocation0 [shape = 'u32[]', space=smem, size = 0x4, offset = 0x4, fixed_abs, tag = 'smem constant byte address 0x4 - core index']
  #allocation1 [shape = 'u32[144,128]{1,0:T(1,128)}', space=vmem, size = 0x12000, scoped, tag = 'internal scratch']
  %s0 = inlined_call_operand.hbm [shape: f32[8,128], index: 0, kind: input, shape index: {}]
  %s1 = inlined_call_operand.hbm [shape: f32[8,128], index: 1, kind: output, shape index: {}]
  %s2 = sld [smem:[#allocation0]]
  $region18: #{tpu_custom_call.1} parent=0
    _
  %s4 = ssub.s32 1, %s2
  %s5 = scalar_select 0, %s4, %s2
  $region1: #{tpu_custom_call.1} parent=0
    #allocation2 [shape = 'u8[4096]{0}', space=vmem, size = 0x1000, scoped, tag = 'input window, operand 0, single buffered']
    #allocation3 [shape = 's32[1]{0}', space=sflag, size = 0x4, scoped, tag = 'scoped memory for tpu_custom_call.1']
    #allocation4 [shape = 's32[1]{0}', space=sflag, size = 0x4, scoped, tag = 'scoped memory for tpu_custom_call.1']
    #allocation5 [shape = 'u8[4096]{0}', space=vmem, size = 0x1000, scoped, tag = 'output window, operand 0, single buffered']
    %6 = vsyncpa [#allocation3], 0
    %7 = vsyncpa [#allocation4], 0
    // Predicated region
    $region2: #{tpu_custom_call.1} parent=1 // pred_check
      _
    $region3: #{tpu_custom_call.1} parent=1 // pred_check_branch
      %9 = sbr.rel (0) target = $region5
    $region4: #{tpu_custom_call.1} parent=1 // pred_region
      %s11 = ssub.s32 128, 128
      %12 = vsyncadd [#allocation3], %s11
      %s14 = sshll.u32 [#allocation2], 4
      %s15 = int_to_ptr.vmem [resolvable:$true] %s14
      %17 = dma.hbm_to_vmem [thread:$0]  %s0, 128, %s15, [#allocation3]
    $region5: #{tpu_custom_call.1} parent=1 // pred_fallthru
      _
    // Predicated region
    $region6: #{tpu_custom_call.1} parent=1 // pred_check
      _
    $region7: #{tpu_custom_call.1} parent=1 // pred_check_branch
      %19 = sbr.rel (0) target = $region9
    $region8: #{tpu_custom_call.1} parent=1 // pred_region
      %20 = dma.done [#allocation3], 128
    $region9: #{tpu_custom_call.1} parent=1 // pred_fallthru
      _
    %v21 = vld [vmem:[#allocation2] sm:$0xff]
    %v22 = verf.f32.pop %v21
    %23 = vst [vmem:[#allocation5] sm:$0xff] %v22
    // Predicated region
    $region10: #{tpu_custom_call.1} parent=1 // pred_check
      _
    $region11: #{tpu_custom_call.1} parent=1 // pred_check_branch
      %25 = sbr.rel (0) target = $region13
    $region12: #{tpu_custom_call.1} parent=1 // pred_region
      %s27 = ssub.s32 128, 128
      %28 = vsyncadd [#allocation4], %s27
      %s30 = sshll.u32 [#allocation5], 4
      %s31 = int_to_ptr.vmem [resolvable:$true] %s30
      %33 = dma.vmem_to_hbm [thread:$0]  %s31, 128, %s1, [#allocation4]
    $region13: #{tpu_custom_call.1} parent=1 // pred_fallthru
      _
    // Predicated region
    $region14: #{tpu_custom_call.1} parent=1 // pred_check
      _
    $region15: #{tpu_custom_call.1} parent=1 // pred_check_branch
      %35 = sbr.rel (0) target = $region17
    $region16: #{tpu_custom_call.1} parent=1 // pred_region
      %36 = dma.done [#allocation4], 128
    $region17: #{tpu_custom_call.1} parent=1 // pred_fallthru
      _
    %37 = vsyncpa [#allocation3], 1
    %38 = vsyncpa [#allocation4], 1

// kernel: _lambda_.11
$region0: #{_lambda_.11}
  #allocation0 [shape = 'u32[]', space=smem, size = 0x4, offset = 0x4, fixed_abs, tag = 'smem constant byte address 0x4 - core index']
  #allocation1 [shape = 'u32[144,128]{1,0:T(1,128)}', space=vmem, size = 0x12000, scoped, tag = 'internal scratch']
  #allocation2 [shape = 'f32[16,96]{1,0:T(8,128)}', space=vmem, size = 0x2000, scoped, tag = 'scratch operand']
  %s0 = inlined_call_operand.vmem [shape: f32[16,32], index: 0, kind: input, shape index: {}]
  %s1 = inlined_call_operand.vmem [shape: bf16[32,96], index: 1, kind: input, shape index: {}]
  %s2 = inlined_call_operand.vmem [shape: f32[1,96], index: 2, kind: input, shape index: {}]
  %s3 = inlined_call_operand.vmem [shape: f32[16,96], index: 3, kind: output, shape index: {}]
  %s4 = sld [smem:[#allocation0]]
  $region34: #{_lambda_.11} parent=0
    _
  %s6 = ssub.s32 1, %s4
  %s7 = scalar_select 0, %s6, %s4
  // Predicated region
  $region2: #{_lambda_.11} parent=0 // pred_check
    _
  $region3: #{_lambda_.11} parent=0 // pred_check_branch
    %9 = sbr.rel (0) target = $region5
  $region4: #{_lambda_.11} parent=0 // pred_region
    _
  $region5: #{_lambda_.11} parent=0 // pred_fallthru
    _
  // Predicated region
  $region6: #{_lambda_.11} parent=0 // pred_check
    _
  $region7: #{_lambda_.11} parent=0 // pred_check_branch
    %11 = sbr.rel (0) target = $region9
  $region8: #{_lambda_.11} parent=0 // pred_region
    _
  $region9: #{_lambda_.11} parent=0 // pred_fallthru
    _
  // Predicated region
  $region10: #{_lambda_.11} parent=0 // pred_check
    _
  $region11: #{_lambda_.11} parent=0 // pred_check_branch
    %13 = sbr.rel (0) target = $region13
  $region12: #{_lambda_.11} parent=0 // pred_region
    _
  $region13: #{_lambda_.11} parent=0 // pred_fallthru
    _
  %v15 = vld [vmem:[%s0] sm:$0xff]
  %v16 = vld [vmem:[%s0 + $0x8] sm:$0xff]
  %v17 = vpack.c.bf16 %v16, %v15
  %v18 = vld [vmem:[%s1] sm:$0xf]
  %v19 = vld [vmem:[%s1 + $0x4] sm:$0xf]
  %v20 = vld [vmem:[%s1 + $0x8] sm:$0xf]
  %v21 = vld [vmem:[%s1 + $0xc] sm:$0xf]
  %v26 = vunpack.c.l.b16 %v18
  %v27 = vunpack.c.l.b16 %v19
  %v28 = vunpack.c.l.b16 %v20
  %v29 = vunpack.c.l.b16 %v21
  %v30 = vpack.c.b16 %v27, %v26
  %v31 = vpack.c.b16 %v29, %v28
  %vm34 = vcmask 261120
  %v36 = vsel %vm34, %v17, 0
  %38 = vmatprep.subr.bf16.mxu0 0
  %39 = vmatpush1.bf16.msra.mxu0 0
  %40 = vmatprep.subr.bf16.mxu0 0
  %41 = vmatpush1.bf16.msra.mxu0 0
  %42 = vmatprep.subr.bf16.mxu0 0
  %43 = vmatpush1.bf16.msra.mxu0 0
  %44 = vmatprep.subr.bf16.mxu0 0
  %45 = vmatpush1.bf16.msra.mxu0 0
  %46 = vmatprep.subr.bf16.mxu0 0
  %47 = vmatpush1.bf16.msra.mxu0 0
  %48 = vmatprep.subr.bf16.mxu0 0
  %49 = vmatpush1.bf16.msra.mxu0 0
  %50 = vmatprep.subr.bf16.mxu0 0
  %51 = vmatpush1.bf16.msra.mxu0 %v31
  %52 = vmatprep.subr.bf16.mxu0 0
  %53 = vmatpush1.bf16.msra.mxu0 %v30
  %54 = vmatprep.subr.bf16.mxu0 0
  %55 = vmatpush2.bf16.msra.mxu0 0
  %56 = vmatprep.subr.bf16.mxu0 0
  %57 = vmatpush2.bf16.msra.mxu0 0
  %58 = vmatprep.subr.bf16.mxu0 0
  %59 = vmatpush2.bf16.msra.mxu0 0
  %60 = vmatprep.subr.bf16.mxu0 0
  %61 = vmatpush2.bf16.msra.mxu0 0
  %62 = vmatprep.subr.bf16.mxu0 0
  %63 = vmatpush2.bf16.msra.mxu0 0
  %64 = vmatprep.subr.bf16.mxu0 0
  %65 = vmatpush2.bf16.msra.mxu0 0
  %66 = vmatprep.subr.bf16.mxu0 0
  %67 = vmatpush2.bf16.msra.mxu0 0
  %68 = vmatprep.subr.bf16.mxu0 0
  %69 = vmatpush2.bf16.msra.mxu0 0
  %70 = vmatprep.mubr.bf16.mxu0 0
  %71 = vmatmul.mubr.bf16.gmra.mxu0 %v36
  %v72 = vpop.f32.mrf.mxu0
  %v73 = vadd.f32 0.0, %v72
  %v74 = vpop.f32.mrf.mxu0
  %v75 = vpop.f32.mrf.mxu0
  %v76 = vadd.f32 0.0, %v75
  %v77 = vpop.f32.mrf.mxu0
  %78 = vdwg.mxu0
  %p79 = scmp.eq.s32.totalorder 0, 0
  // Predicated region
  $region14: #{_lambda_.11} parent=0 // pred_check
    %p80 = pneg %p79
  $region15: #{_lambda_.11} parent=0 // pred_check_branch
    %82 = sbr.rel (%p80) target = $region17
  $region16: #{_lambda_.11} parent=0 // pred_region
    %vm83 = vcmask 785408
    %84 = vst.msk [vmem:[#allocation2] sm:$0xff] %vm83, %v73
    %85 = vst.msk [vmem:[#allocation2 + $0x8] sm:$0xff] %vm83, %v76
  $region17: #{_lambda_.11} parent=0 // pred_fallthru
    _
  %p86 = scmp.gt.s32.totalorder 0, 0
  // Predicated region
  $region18: #{_lambda_.11} parent=0 // pred_check
    %p87 = pneg %p86
  $region19: #{_lambda_.11} parent=0 // pred_check_branch
    %89 = sbr.rel (%p87) target = $region21
  $region20: #{_lambda_.11} parent=0 // pred_region
    %v90 = vld [vmem:[#allocation2] sm:$0xff]
    %v91 = vld [vmem:[#allocation2 + $0x8] sm:$0xff]
    %v92 = vadd.f32 %v90, %v73
    %v93 = vadd.f32 %v91, %v76
    %vm94 = vcmask 785408
    %95 = vst.msk [vmem:[#allocation2] sm:$0xff] %vm94, %v92
    %96 = vst.msk [vmem:[#allocation2 + $0x8] sm:$0xff] %vm94, %v93
  $region21: #{_lambda_.11} parent=0 // pred_fallthru
    _
  // Predicated region
  $region22: #{_lambda_.11} parent=0 // pred_check
    %p97 = pneg %p79
  $region23: #{_lambda_.11} parent=0 // pred_check_branch
    %99 = sbr.rel (%p97) target = $region25
  $region24: #{_lambda_.11} parent=0 // pred_region
    %v100 = vld [vmem:[#allocation2] sm:$0xff]
    %v101 = vld [vmem:[#allocation2 + $0x8] sm:$0xff]
    %v102 = vld [vmem:[%s2] sm:$0x1]
    %v104 = vlaneseq
    %v105 = vshrl.u32 %v104, 7
    %v106 = vsub.s32 0, %v105
    %v107 = vrot.slane %v102, %v106
    %v109 = vadd.f32 %v100, %v107
    %v110 = vadd.f32 %v101, %v107
    %vm111 = vcmask 785408
    %112 = vst.msk [vmem:[%s3] sm:$0xff] %vm111, %v109
    %113 = vst.msk [vmem:[%s3 + $0x8] sm:$0xff] %vm111, %v110
  $region25: #{_lambda_.11} parent=0 // pred_fallthru
    _
  // Predicated region
  $region26: #{_lambda_.11} parent=0 // pred_check
    _
  $region27: #{_lambda_.11} parent=0 // pred_check_branch
    %115 = sbr.rel (0) target = $region29
  $region28: #{_lambda_.11} parent=0 // pred_region
    _
  $region29: #{_lambda_.11} parent=0 // pred_fallthru
    _
  // Predicated region
  $region30: #{_lambda_.11} parent=0 // pred_check
    _
  $region31: #{_lambda_.11} parent=0 // pred_check_branch
    %117 = sbr.rel (0) target = $region33
  $region32: #{_lambda_.11} parent=0 // pred_region
    _
  $region33: #{_lambda_.11} parent=0 // pred_fallthru
    _

// kernel: _lambda_.12
$region0: #{_lambda_.12}
  #allocation0 [shape = 'u32[]', space=smem, size = 0x4, offset = 0x4, fixed_abs, tag = 'smem constant byte address 0x4 - core index']
  #allocation1 [shape = 'u32[144,128]{1,0:T(1,128)}', space=vmem, size = 0x12000, scoped, tag = 'internal scratch']
  #allocation2 [shape = 'f32[8,1]{1,0:T(8,128)}', space=vmem, size = 0x1000, scoped, tag = 'scratch operand']
  #allocation3 [shape = 'f32[8,1]{1,0:T(8,128)}', space=vmem, size = 0x1000, scoped, tag = 'scratch operand']
  #allocation4 [shape = 'f32[8,8]{1,0:T(8,128)}', space=vmem, size = 0x1000, scoped, tag = 'scratch operand']
  %s0 = inlined_call_operand.vmem [shape: f32[8,8,8], index: 0, kind: input, shape index: {}]
  %s1 = inlined_call_operand.vmem [shape: f32[8,8,8], index: 1, kind: input, shape index: {}]
  %s2 = inlined_call_operand.vmem [shape: f32[8,8,8], index: 2, kind: input, shape index: {}]
  %s3 = inlined_call_operand.vmem [shape: f32[8,8,8], index: 3, kind: output, shape index: {}]
  %s4 = sld [smem:[#allocation0]]
  $region57: #{_lambda_.12} parent=0
    _
  %s6 = ssub.s32 1, %s4
  %s7 = scalar_select 0, %s6, %s4
  loop: start=0, step=1, limit=10
  $region2: #{_lambda_.12} parent=0 // loop_pre_header
    _
  $region3: #{_lambda_.12} parent=0 // loop_header
    %s9 = sphi 0, %s13
    %p10 = scmp.ge.s32.totalorder %s9, 10
    %s16 = sphi 0, %s35
    %s17 = sphi 0, %s31
    %s18 = sphi 0, %s27
    %s19 = sphi 0, %s16
    %s20 = sphi 0, %s17
    %s21 = sphi 0, %s18
    %s22 = sphi 0, %s19
    %s23 = sphi 0, %s20
    %s24 = sphi 0, %s21
    %s40 = sphi 0, %s42
    %s43 = sphi 0, %s40
    %s44 = sphi 0, %s43
    %s60 = sphi 0, %s44
    %s68 = sphi 0, %s70
    %s71 = sphi 0, %s68
    %s72 = sphi 0, %s71
    %s88 = sphi 0, %s72
    %s96 = sphi 0, %s98
    %s99 = sphi 0, %s96
    %s100 = sphi 0, %s99
    %s116 = sphi 0, %s100
    %s124 = sphi 0, %s126
    %s127 = sphi 0, %s124
    %s128 = sphi 0, %s127
    %s144 = sphi 0, %s128
  $region4: #{_lambda_.12} parent=0 // loop_header_branch
    %12 = sbr.rel (%p10) target = $region8
  $region5: #{_lambda_.12} parent=0 // loop_body
    %s14 = ssub.s32 %s9, 1
    %s15 = ssub.s32 %s9, 2
    %s25 = sadd.s32 1, %s18
    %p26 = scmp.ge.s32.totalorder %s25, 1
    %s27 = scalar_select %p26, 0, %s25
    %s28 = sadd.s32 1, %s17
    %s29 = scalar_select %p26, %s28, %s17
    %p30 = scmp.ge.s32.totalorder %s29, 1
    %s31 = scalar_select %p30, 0, %s29
    %s32 = sadd.s32 1, %s16
    %s33 = scalar_select %p30, %s32, %s16
    %p34 = scmp.ge.s32.totalorder %s33, 8
    %s35 = scalar_select %p34, 0, %s33
    %s36 = ssub.s32 %s16, %s35
    %s37 = ssub.s32 %s17, %s31
    %s38 = sor.u32 %s36, %s37
    %p39 = scmp.eq.s32.totalorder %s38, 0
    %s41 = sadd.s32 %s40, 1
    %s42 = scalar_select %p39, %s40, %s41
    %p45 = pneg %p39
    %p46 = scmp.eq.s32.totalorder %s9, 7
    %p47 = por %p45, %p46
    %p48 = scmp.ne.s32.totalorder %s40, %s43
    %p49 = scmp.eq.s32.totalorder %s9, 0
    %p50 = por %p48, %p49
    %p51 = scmp.ne.s32.totalorder %s40, %s43
    %p52 = scmp.eq.s32.totalorder %s14, 7
    %p53 = por %p51, %p52
    %p54 = scmp.ne.s32.totalorder %s43, %s44
    %p55 = scmp.eq.s32.totalorder %s14, 0
    %p56 = por %p54, %p55
    %p57 = scmp.ne.s32.totalorder %s43, %s44
    %p58 = scmp.eq.s32.totalorder %s15, 7
    %p59 = por %p57, %p58
    %p61 = scmp.ne.s32.totalorder %s44, %s60
    %p62 = scmp.eq.s32.totalorder %s15, 0
    %p63 = por %p61, %p62
    %s64 = ssub.s32 %s16, %s35
    %s65 = ssub.s32 %s18, %s27
    %s66 = sor.u32 %s64, %s65
    %p67 = scmp.eq.s32.totalorder %s66, 0
    %s69 = sadd.s32 %s68, 1
    %s70 = scalar_select %p67, %s68, %s69
    %p73 = pneg %p67
    %p74 = scmp.eq.s32.totalorder %s9, 7
    %p75 = por %p73, %p74
    %p76 = scmp.ne.s32.totalorder %s68, %s71
    %p77 = scmp.eq.s32.totalorder %s9, 0
    %p78 = por %p76, %p77
    %p79 = scmp.ne.s32.totalorder %s68, %s71
    %p80 = scmp.eq.s32.totalorder %s14, 7
    %p81 = por %p79, %p80
    %p82 = scmp.ne.s32.totalorder %s71, %s72
    %p83 = scmp.eq.s32.totalorder %s14, 0
    %p84 = por %p82, %p83
    %p85 = scmp.ne.s32.totalorder %s71, %s72
    %p86 = scmp.eq.s32.totalorder %s15, 7
    %p87 = por %p85, %p86
    %p89 = scmp.ne.s32.totalorder %s72, %s88
    %p90 = scmp.eq.s32.totalorder %s15, 0
    %p91 = por %p89, %p90
    %s92 = ssub.s32 %s16, %s35
    %s93 = ssub.s32 %s18, %s27
    %s94 = sor.u32 %s92, %s93
    %p95 = scmp.eq.s32.totalorder %s94, 0
    %s97 = sadd.s32 %s96, 1
    %s98 = scalar_select %p95, %s96, %s97
    %p101 = pneg %p95
    %p102 = scmp.eq.s32.totalorder %s9, 7
    %p103 = por %p101, %p102
    %p104 = scmp.ne.s32.totalorder %s96, %s99
    %p105 = scmp.eq.s32.totalorder %s9, 0
    %p106 = por %p104, %p105
    %p107 = scmp.ne.s32.totalorder %s96, %s99
    %p108 = scmp.eq.s32.totalorder %s14, 7
    %p109 = por %p107, %p108
    %p110 = scmp.ne.s32.totalorder %s99, %s100
    %p111 = scmp.eq.s32.totalorder %s14, 0
    %p112 = por %p110, %p111
    %p113 = scmp.ne.s32.totalorder %s99, %s100
    %p114 = scmp.eq.s32.totalorder %s15, 7
    %p115 = por %p113, %p114
    %p117 = scmp.ne.s32.totalorder %s100, %s116
    %p118 = scmp.eq.s32.totalorder %s15, 0
    %p119 = por %p117, %p118
    %s120 = ssub.s32 %s16, %s35
    %s121 = ssub.s32 %s17, %s31
    %s122 = sor.u32 %s120, %s121
    %p123 = scmp.eq.s32.totalorder %s122, 0
    %s125 = sadd.s32 %s124, 1
    %s126 = scalar_select %p123, %s124, %s125
    %p129 = pneg %p123
    %p130 = scmp.eq.s32.totalorder %s9, 7
    %p131 = por %p129, %p130
    %p132 = scmp.ne.s32.totalorder %s124, %s127
    %p133 = scmp.eq.s32.totalorder %s9, 0
    %p134 = por %p132, %p133
    %p135 = scmp.ne.s32.totalorder %s124, %s127
    %p136 = scmp.eq.s32.totalorder %s14, 7
    %p137 = por %p135, %p136
    %p138 = scmp.ne.s32.totalorder %s127, %s128
    %p139 = scmp.eq.s32.totalorder %s14, 0
    %p140 = por %p138, %p139
    %p141 = scmp.ne.s32.totalorder %s127, %s128
    %p142 = scmp.eq.s32.totalorder %s15, 7
    %p143 = por %p141, %p142
    %p145 = scmp.ne.s32.totalorder %s128, %s144
    %p146 = scmp.eq.s32.totalorder %s15, 0
    %p147 = por %p145, %p146
    %p148 = scmp.le.s32.totalorder 1, %s9
    %p149 = scmp.lt.s32.totalorder %s9, 9
    %p150 = pnand %p148, %p149
    %p151 = pneg %p150
    // Predicated region
    $region9: #{_lambda_.12} parent=5 // pred_check
      _
    $region10: #{_lambda_.12} parent=5 // pred_check_branch
      %153 = sbr.rel (%p150) target = $region12
    $region11: #{_lambda_.12} parent=5 // pred_region
      %s154 = ssub.s32 %s9, 1
    $region12: #{_lambda_.12} parent=5 // pred_fallthru
      _
    %p155 = scmp.lt.s32.totalorder %s9, 8
    // Predicated region
    $region13: #{_lambda_.12} parent=5 // pred_check
      %p156 = pneg %p155
    $region14: #{_lambda_.12} parent=5 // pred_check_branch
      %158 = sbr.rel (%p156) target = $region16
    $region15: #{_lambda_.12} parent=5 // pred_region
      // Predicated region
      $region17: #{_lambda_.12} parent=15 // pred_check
        %p159 = pneg %p50
      $region18: #{_lambda_.12} parent=15 // pred_check_branch
        %161 = sbr.rel (%p159) target = $region20
      $region19: #{_lambda_.12} parent=15 // pred_region
        %p162 = scmp.lt.s32.totalorder %s16, 7
        %s163 = scalar_select %p162, %s16, 7
        %p164 = scmp.lt.s32.totalorder %s17, 0
        %s165 = scalar_select %p164, %s17, 0
        %s166 = sadd.s32 %s165, %s163
        %s167 = smul.addr %s166, 8
        %s168 = scalar_lea.vmem %s0, %s167
      $region20: #{_lambda_.12} parent=15 // pred_fallthru
        _
      // Predicated region
      $region21: #{_lambda_.12} parent=15 // pred_check
        %p169 = pneg %p78
      $region22: #{_lambda_.12} parent=15 // pred_check_branch
        %171 = sbr.rel (%p169) target = $region24
      $region23: #{_lambda_.12} parent=15 // pred_region
        %p172 = scmp.lt.s32.totalorder %s16, 7
        %s173 = scalar_select %p172, %s16, 7
        %p174 = scmp.lt.s32.totalorder %s18, 0
        %s175 = scalar_select %p174, %s18, 0
        %s176 = sadd.s32 %s175, %s173
        %s177 = smul.addr %s176, 8
        %s178 = scalar_lea.vmem %s1, %s177
      $region24: #{_lambda_.12} parent=15 // pred_fallthru
        _
      // Predicated region
      $region25: #{_lambda_.12} parent=15 // pred_check
        %p179 = pneg %p106
      $region26: #{_lambda_.12} parent=15 // pred_check_branch
        %181 = sbr.rel (%p179) target = $region28
      $region27: #{_lambda_.12} parent=15 // pred_region
        %p182 = scmp.lt.s32.totalorder %s16, 7
        %s183 = scalar_select %p182, %s16, 7
        %p184 = scmp.lt.s32.totalorder %s18, 0
        %s185 = scalar_select %p184, %s18, 0
        %s186 = sadd.s32 %s185, %s183
        %s187 = smul.addr %s186, 8
        %s188 = scalar_lea.vmem %s2, %s187
      $region28: #{_lambda_.12} parent=15 // pred_fallthru
        _
    $region16: #{_lambda_.12} parent=5 // pred_fallthru
      _
    %p189 = scmp.le.s32.totalorder 1, %s9
    %p190 = scmp.lt.s32.totalorder %s9, 9
    %p191 = pnand %p189, %p190
    %p192 = pneg %p191
    // Predicated region
    $region29: #{_lambda_.12} parent=5 // pred_check
      _
    $region30: #{_lambda_.12} parent=5 // pred_check_branch
      %194 = sbr.rel (%p191) target = $region32
    $region31: #{_lambda_.12} parent=5 // pred_region
      %s195 = ssub.s32 %s9, 1
      %p196 = scmp.lt.s32.totalorder %s19, 7
      %s197 = scalar_select %p196, %s19, 7
      %p198 = scmp.lt.s32.totalorder %s20, 0
      %s199 = scalar_select %p198, %s20, 0
      %s200 = sadd.s32 %s199, %s197
      %s201 = smul.addr %s200, 8
      %s202 = scalar_lea.vmem %s0, %s201
      %p203 = pneg %p56
      %p204 = pneg %p53
      %p205 = scmp.lt.s32.totalorder %s19, 7
      %s206 = scalar_select %p205, %s19, 7
      %p207 = scmp.lt.s32.totalorder %s21, 0
      %s208 = scalar_select %p207, %s21, 0
      %s209 = sadd.s32 %s208, %s206
      %s210 = smul.addr %s209, 8
      %s211 = scalar_lea.vmem %s1, %s210
      %p212 = pneg %p84
      %p213 = pneg %p81
      %p214 = scmp.lt.s32.totalorder %s19, 7
      %s215 = scalar_select %p214, %s19, 7
      %p216 = scmp.lt.s32.totalorder %s21, 0
      %s217 = scalar_select %p216, %s21, 0
      %s218 = sadd.s32 %s217, %s215
      %s219 = smul.addr %s218, 8
      %s220 = scalar_lea.vmem %s2, %s219
      %p221 = pneg %p112
      %p222 = pneg %p109
      %p223 = pneg %p140
      %p224 = pneg %p137
      %p225 = scmp.lt.s32.totalorder %s19, 7
      %s226 = scalar_select %p225, %s19, 7
      %p227 = scmp.lt.s32.totalorder %s20, 0
      %s228 = scalar_select %p227, %s20, 0
      %s229 = sadd.s32 %s228, %s226
      %s230 = smul.addr %s229, 8
      %s231 = scalar_lea.vmem %s3, %s230
      %p232 = scmp.lt.s32.totalorder %s19, 7
      %s233 = scalar_select %p232, %s19, 7
      %p234 = scmp.lt.s32.totalorder %s20, 0
      %s235 = scalar_select %p234, %s20, 0
      %s236 = sadd.s32 %s235, %s233
      %s237 = smul.addr %s236, 8
      %s238 = scalar_lea.vmem %s0, %s237
      %p239 = scmp.lt.s32.totalorder %s19, 7
      %s240 = scalar_select %p239, %s19, 7
      %p241 = scmp.lt.s32.totalorder %s21, 0
      %s242 = scalar_select %p241, %s21, 0
      %s243 = sadd.s32 %s242, %s240
      %s244 = smul.addr %s243, 8
      %s245 = scalar_lea.vmem %s1, %s244
      %p246 = scmp.lt.s32.totalorder %s19, 7
      %s247 = scalar_select %p246, %s19, 7
      %p248 = scmp.lt.s32.totalorder %s21, 0
      %s249 = scalar_select %p248, %s21, 0
      %s250 = sadd.s32 %s249, %s247
      %s251 = smul.addr %s250, 8
      %s252 = scalar_lea.vmem %s2, %s251
      %p253 = scmp.lt.s32.totalorder %s19, 7
      %s254 = scalar_select %p253, %s19, 7
      %p255 = scmp.lt.s32.totalorder %s20, 0
      %s256 = scalar_select %p255, %s20, 0
      %s257 = sadd.s32 %s256, %s254
      %s258 = smul.addr %s257, 8
      %s259 = scalar_lea.vmem %s3, %s258
      %p261 = scmp.eq.s32.totalorder %s21, 0
      // Predicated region
      $region33: #{_lambda_.12} parent=31 // pred_check
        %p262 = pneg %p261
      $region34: #{_lambda_.12} parent=31 // pred_check_branch
        %264 = sbr.rel (%p262) target = $region36
      $region35: #{_lambda_.12} parent=31 // pred_region
        %vm265 = vcmask 7168
        %266 = vst.msk [vmem:[#allocation2] sm:$0xff] %vm265, -inf
        %267 = vst.msk [vmem:[#allocation3] sm:$0xff] %vm265, 0.0
        %vm268 = vcmask 64512
        %269 = vst.msk [vmem:[#allocation4] sm:$0xff] %vm268, 0.0
      $region36: #{_lambda_.12} parent=31 // pred_fallthru
        _
      %s270 = smul.u32 %s21, 8
      %s271 = smul.u32 %s20, 8
      %s272 = sadd.s32 %s271, 7
      %p273 = scmp.le.s32.totalorder %s270, %s272
      // Predicated region
      $region37: #{_lambda_.12} parent=31 // pred_check
        %p274 = pneg %p273
      $region38: #{_lambda_.12} parent=31 // pred_check_branch
        %276 = sbr.rel (%p274) target = $region40
      $region39: #{_lambda_.12} parent=31 // pred_region
        %v277 = vld [vmem:[%s238] sm:$0xff]
        %v278 = vpack.c.bf16 %v277, %v277
        %v279 = vld [vmem:[%s245] sm:$0xff]
        %v280 = vpack.c.bf16 %v279, %v279
        %vm281 = vcmask 64512
        %v283 = vsel %vm281, %v278, 0
        %v286 = vsel %vm281, %v280, 0
        %288 = vmatprep.subr.bf16.mxu0 0
        %289 = vmatpush1.bf16.xpose.msra.mxu0 0
        %290 = vmatprep.subr.bf16.mxu0 0
        %291 = vmatpush1.bf16.xpose.msra.mxu0 0
        %292 = vmatprep.subr.bf16.mxu0 0
        %293 = vmatpush1.bf16.xpose.msra.mxu0 0
        %294 = vmatprep.subr.bf16.mxu0 0
        %295 = vmatpush1.bf16.xpose.msra.mxu0 0
        %296 = vmatprep.subr.bf16.mxu0 0
        %297 = vmatpush1.bf16.xpose.msra.mxu0 0
        %298 = vmatprep.subr.bf16.mxu0 0
        %299 = vmatpush1.bf16.xpose.msra.mxu0 0
        %300 = vmatprep.subr.bf16.mxu0 0
        %301 = vmatpush1.bf16.xpose.msra.mxu0 0
        %302 = vmatprep.subr.bf16.mxu0 0
        %303 = vmatpush1.bf16.xpose.msra.mxu0 %v286
        %304 = vmatprep.subr.bf16.mxu0 0
        %305 = vmatpush2.bf16.xpose.msra.mxu0 0
        %306 = vmatprep.subr.bf16.mxu0 0
        %307 = vmatpush2.bf16.xpose.msra.mxu0 0
        %308 = vmatprep.subr.bf16.mxu0 0
        %309 = vmatpush2.bf16.xpose.msra.mxu0 0
        %310 = vmatprep.subr.bf16.mxu0 0
        %311 = vmatpush2.bf16.xpose.msra.mxu0 0
        %312 = vmatprep.subr.bf16.mxu0 0
        %313 = vmatpush2.bf16.xpose.msra.mxu0 0
        %314 = vmatprep.subr.bf16.mxu0 0
        %315 = vmatpush2.bf16.xpose.msra.mxu0 0
        %316 = vmatprep.subr.bf16.mxu0 0
        %317 = vmatpush2.bf16.xpose.msra.mxu0 0
        %318 = vmatprep.subr.bf16.mxu0 0
        %319 = vmatpush2.bf16.xpose.msra.mxu0 0
        %320 = vmatprep.mubr.bf16.mxu0 0
        %321 = vmatmul.mubr.bf16.gmra.mxu0 %v283
        %v322 = vpop.f32.mrf.mxu0
        %v323 = vadd.f32 0.0, %v322
        %v324 = vpop.f32.mrf.mxu0
        %v325 = vpop.f32.mrf.mxu0
        %v326 = vpop.f32.mrf.mxu0
        %327 = vdwg.mxu0
        %v328 = vmul.f32 %v323, 0.35355338
        %v329 = vlaneseq
        %v330 = vshrl.u32 %v329, 7
        %v331 = vstv %s271
        %v332 = vadd.s32 %v331, %v330
        %v333 = vlaneseq
        %v334 = vand.u32 %v333, 127
        %v335 = vstv %s270
        %v336 = vadd.s32 %v335, %v334
        %vm337 = vcmp.ge.s32.totalorder %v332, %v336
        %v338 = vsel %vm337, %v328, -1e+30
        %v339 = vld [vmem:[#allocation2] sm:$0xff]
        %v340 = vsel %vm281, %v338, -inf
        %341 = vmax.xlane.f32.xlu0 %v340
        %v342 = vpop.xlane.xlu0 %341
        %v343 = vmax.f32 %v339, %v342
        %v344 = vsub.f32 %v339, %v343
        %v345 = vmul.f32 %v344, 1.442695
        %v346 = vpow.pop %v345
        %348 = vset.pattern.permute.xlu0 0
        %349 = vperm.xlu0 %348, %v343
        %v350 = vpop.permute.xlu0 %349
        %v352 = vsub.f32 %v338, %v350
        %v353 = vmul.f32 %v352, 1.442695
        %v354 = vpow.pop %v353
        %v355 = vld [vmem:[#allocation3] sm:$0xff]
        %v356 = vmul.f32 %v346, %v355
        %v357 = vsel %vm281, %v354, 0.0
        %358 = vadd.xlane.f32.xlu0 %v357
        %v359 = vpop.xlane.xlu0 %358
        %v360 = vadd.f32 %v356, %v359
        %vm361 = vcmask 7168
        %362 = vst.msk [vmem:[#allocation3] sm:$0xff] %vm361, %v360
        %v363 = vld [vmem:[#allocation4] sm:$0xff]
        %365 = vset.pattern.permute.xlu0 0
        %366 = vperm.xlu0 %365, %v346
        %v367 = vpop.permute.xlu0 %366
        %v369 = vmul.f32 %v367, %v363
        %v370 = vpack.c.bf16 %v354, %v354
        %v371 = vld [vmem:[%s252] sm:$0xff]
        %v372 = vpack.c.bf16 %v371, %v371
        %v374 = vsel %vm281, %v370, 0
        %vm376 = vcmask 1043456
        %v378 = vsel %vm376, %v372, 0
        %380 = vmatprep.subr.bf16.mxu0 0
        %381 = vmatpush1.bf16.msra.mxu0 0
        %382 = vmatprep.subr.bf16.mxu0 0
        %383 = vmatpush1.bf16.msra.mxu0 0
        %384 = vmatprep.subr.bf16.mxu0 0
        %385 = vmatpush1.bf16.msra.mxu0 0
        %386 = vmatprep.subr.bf16.mxu0 0
        %387 = vmatpush1.bf16.msra.mxu0 0
        %388 = vmatprep.subr.bf16.mxu0 0
        %389 = vmatpush1.bf16.msra.mxu0 0
        %390 = vmatprep.subr.bf16.mxu0 0
        %391 = vmatpush1.bf16.msra.mxu0 0
        %392 = vmatprep.subr.bf16.mxu0 0
        %393 = vmatpush1.bf16.msra.mxu0 0
        %394 = vmatprep.subr.bf16.mxu0 0
        %395 = vmatpush1.bf16.msra.mxu0 %v378
        %396 = vmatprep.subr.bf16.mxu0 0
        %397 = vmatpush2.bf16.msra.mxu0 0
        %398 = vmatprep.subr.bf16.mxu0 0
        %399 = vmatpush2.bf16.msra.mxu0 0
        %400 = vmatprep.subr.bf16.mxu0 0
        %401 = vmatpush2.bf16.msra.mxu0 0
        %402 = vmatprep.subr.bf16.mxu0 0
        %403 = vmatpush2.bf16.msra.mxu0 0
        %404 = vmatprep.subr.bf16.mxu0 0
        %405 = vmatpush2.bf16.msra.mxu0 0
        %406 = vmatprep.subr.bf16.mxu0 0
        %407 = vmatpush2.bf16.msra.mxu0 0
        %408 = vmatprep.subr.bf16.mxu0 0
        %409 = vmatpush2.bf16.msra.mxu0 0
        %410 = vmatprep.subr.bf16.mxu0 0
        %411 = vmatpush2.bf16.msra.mxu0 0
        %412 = vmatprep.mubr.bf16.mxu0 0
        %413 = vmatmul.mubr.bf16.gmra.mxu0 %v374
        %v414 = vpop.f32.mrf.mxu0
        %v415 = vadd.f32 0.0, %v414
        %v416 = vpop.f32.mrf.mxu0
        %v417 = vpop.f32.mrf.mxu0
        %v418 = vpop.f32.mrf.mxu0
        %419 = vdwg.mxu0
        %v420 = vadd.f32 %v369, %v415
        %421 = vst.msk [vmem:[#allocation4] sm:$0xff] %vm281, %v420
        %422 = vst.msk [vmem:[#allocation2] sm:$0xff] %vm361, %v343
      $region40: #{_lambda_.12} parent=31 // pred_fallthru
        _
      // Predicated region
      $region41: #{_lambda_.12} parent=31 // pred_check
        %p423 = pneg %p261
      $region42: #{_lambda_.12} parent=31 // pred_check_branch
        %425 = sbr.rel (%p423) target = $region44
      $region43: #{_lambda_.12} parent=31 // pred_region
        %v426 = vld [vmem:[#allocation4] sm:$0xff]
        %v427 = vld [vmem:[#allocation3] sm:$0xff]
        %v428 = vrcp.pop %v427
        %430 = vset.pattern.permute.xlu0 0
        %431 = vperm.xlu0 %430, %v428
        %v432 = vpop.permute.xlu0 %431
        %v434 = vmul.f32 %v426, %v432
        %vm435 = vcmask 64512
        %436 = vst.msk [vmem:[%s259] sm:$0xff] %vm435, %v434
      $region44: #{_lambda_.12} parent=31 // pred_fallthru
        _
      %p437 = scmp.lt.s32.totalorder %s19, 7
      %s438 = scalar_select %p437, %s19, 7
      %p439 = scmp.lt.s32.totalorder %s20, 0
      %s440 = scalar_select %p439, %s20, 0
      %s441 = sadd.s32 %s440, %s438
      %s442 = smul.addr %s441, 8
      %s443 = scalar_lea.vmem %s3, %s442
      // Predicated region
      $region45: #{_lambda_.12} parent=31 // pred_check
        %p444 = pneg %p137
      $region46: #{_lambda_.12} parent=31 // pred_check_branch
        %446 = sbr.rel (%p444) target = $region48
      $region47: #{_lambda_.12} parent=31 // pred_region
        _
      $region48: #{_lambda_.12} parent=31 // pred_fallthru
        _
    $region32: #{_lambda_.12} parent=5 // pred_fallthru
      _
    %p447 = scmp.le.s32.totalorder 2, %s9
    // Predicated region
    $region49: #{_lambda_.12} parent=5 // pred_check
      %p448 = pneg %p447
    $region50: #{_lambda_.12} parent=5 // pred_check_branch
      %450 = sbr.rel (%p448) target = $region52
    $region51: #{_lambda_.12} parent=5 // pred_region
      %s451 = ssub.s32 %s9, 2
      // Predicated region
      $region53: #{_lambda_.12} parent=51 // pred_check
        %p452 = pneg %p143
      $region54: #{_lambda_.12} parent=51 // pred_check_branch
        %454 = sbr.rel (%p452) target = $region56
      $region55: #{_lambda_.12} parent=51 // pred_region
        %p455 = scmp.lt.s32.totalorder %s22, 7
        %s456 = scalar_select %p455, %s22, 7
        %p457 = scmp.lt.s32.totalorder %s23, 0
        %s458 = scalar_select %p457, %s23, 0
        %s459 = sadd.s32 %s458, %s456
        %s460 = smul.addr %s459, 8
        %s461 = scalar_lea.vmem %s3, %s460
      $region56: #{_lambda_.12} parent=51 // pred_fallthru
        _
    $region52: #{_lambda_.12} parent=5 // pred_fallthru
      _
  $region6: #{_lambda_.12} parent=0 // loop_footer
    %s13 = sadd.s32 1, %s9
  $region7: #{_lambda_.12} parent=0 // loop_footer_branch
    %8 = sbr.rel target = $region3
  $region8: #{_lambda_.12} parent=0 // loop_exit
    _

// kernel: _lambda_.14
$region0: #{_lambda_.14}
  #allocation0 [shape = 'u32[]', space=smem, size = 0x4, offset = 0x4, fixed_abs, tag = 'smem constant byte address 0x4 - core index']
  #allocation1 [shape = 'u32[144,128]{1,0:T(1,128)}', space=vmem, size = 0x12000, scoped, tag = 'internal scratch']
  #allocation2 [shape = 'f32[16,128]{1,0:T(8,128)}', space=vmem, size = 0x2000, scoped, tag = 'scratch operand']
  %s0 = inlined_call_operand.vmem [shape: f32[16,32], index: 0, kind: input, shape index: {}]
  %s1 = inlined_call_operand.vmem [shape: bf16[32,128], index: 1, kind: input, shape index: {}]
  %s2 = inlined_call_operand.vmem [shape: f32[1,128], index: 2, kind: input, shape index: {}]
  %s3 = inlined_call_operand.vmem [shape: f32[16,128], index: 3, kind: output, shape index: {}]
  %s4 = sld [smem:[#allocation0]]
  $region34: #{_lambda_.14} parent=0
    _
  %s6 = ssub.s32 1, %s4
  %s7 = scalar_select 0, %s6, %s4
  // Predicated region
  $region2: #{_lambda_.14} parent=0 // pred_check
    _
  $region3: #{_lambda_.14} parent=0 // pred_check_branch
    %9 = sbr.rel (0) target = $region5
  $region4: #{_lambda_.14} parent=0 // pred_region
    _
  $region5: #{_lambda_.14} parent=0 // pred_fallthru
    _
  // Predicated region
  $region6: #{_lambda_.14} parent=0 // pred_check
    _
  $region7: #{_lambda_.14} parent=0 // pred_check_branch
    %11 = sbr.rel (0) target = $region9
  $region8: #{_lambda_.14} parent=0 // pred_region
    _
  $region9: #{_lambda_.14} parent=0 // pred_fallthru
    _
  // Predicated region
  $region10: #{_lambda_.14} parent=0 // pred_check
    _
  $region11: #{_lambda_.14} parent=0 // pred_check_branch
    %13 = sbr.rel (0) target = $region13
  $region12: #{_lambda_.14} parent=0 // pred_region
    _
  $region13: #{_lambda_.14} parent=0 // pred_fallthru
    _
  %v15 = vld [vmem:[%s0] sm:$0xff]
  %v16 = vld [vmem:[%s0 + $0x8] sm:$0xff]
  %v17 = vpack.c.bf16 %v16, %v15
  %v18 = vld [vmem:[%s1] sm:$0xf]
  %v19 = vld [vmem:[%s1 + $0x4] sm:$0xf]
  %v20 = vld [vmem:[%s1 + $0x8] sm:$0xf]
  %v21 = vld [vmem:[%s1 + $0xc] sm:$0xf]
  %v26 = vunpack.c.l.b16 %v18
  %v27 = vunpack.c.l.b16 %v19
  %v28 = vunpack.c.l.b16 %v20
  %v29 = vunpack.c.l.b16 %v21
  %v30 = vpack.c.b16 %v27, %v26
  %v31 = vpack.c.b16 %v29, %v28
  %vm34 = vcmask 261120
  %v36 = vsel %vm34, %v17, 0
  %38 = vmatprep.subr.bf16.mxu0 0
  %39 = vmatpush1.bf16.msra.mxu0 0
  %40 = vmatprep.subr.bf16.mxu0 0
  %41 = vmatpush1.bf16.msra.mxu0 0
  %42 = vmatprep.subr.bf16.mxu0 0
  %43 = vmatpush1.bf16.msra.mxu0 0
  %44 = vmatprep.subr.bf16.mxu0 0
  %45 = vmatpush1.bf16.msra.mxu0 0
  %46 = vmatprep.subr.bf16.mxu0 0
  %47 = vmatpush1.bf16.msra.mxu0 0
  %48 = vmatprep.subr.bf16.mxu0 0
  %49 = vmatpush1.bf16.msra.mxu0 0
  %50 = vmatprep.subr.bf16.mxu0 0
  %51 = vmatpush1.bf16.msra.mxu0 %v31
  %52 = vmatprep.subr.bf16.mxu0 0
  %53 = vmatpush1.bf16.msra.mxu0 %v30
  %54 = vmatprep.subr.bf16.mxu0 0
  %55 = vmatpush2.bf16.msra.mxu0 0
  %56 = vmatprep.subr.bf16.mxu0 0
  %57 = vmatpush2.bf16.msra.mxu0 0
  %58 = vmatprep.subr.bf16.mxu0 0
  %59 = vmatpush2.bf16.msra.mxu0 0
  %60 = vmatprep.subr.bf16.mxu0 0
  %61 = vmatpush2.bf16.msra.mxu0 0
  %62 = vmatprep.subr.bf16.mxu0 0
  %63 = vmatpush2.bf16.msra.mxu0 0
  %64 = vmatprep.subr.bf16.mxu0 0
  %65 = vmatpush2.bf16.msra.mxu0 0
  %66 = vmatprep.subr.bf16.mxu0 0
  %67 = vmatpush2.bf16.msra.mxu0 0
  %68 = vmatprep.subr.bf16.mxu0 0
  %69 = vmatpush2.bf16.msra.mxu0 0
  %70 = vmatprep.mubr.bf16.mxu0 0
  %71 = vmatmul.mubr.bf16.gmra.mxu0 %v36
  %v72 = vpop.f32.mrf.mxu0
  %v73 = vadd.f32 0.0, %v72
  %v74 = vpop.f32.mrf.mxu0
  %v75 = vpop.f32.mrf.mxu0
  %v76 = vadd.f32 0.0, %v75
  %v77 = vpop.f32.mrf.mxu0
  %78 = vdwg.mxu0
  %p79 = scmp.eq.s32.totalorder 0, 0
  // Predicated region
  $region14: #{_lambda_.14} parent=0 // pred_check
    %p80 = pneg %p79
  $region15: #{_lambda_.14} parent=0 // pred_check_branch
    %82 = sbr.rel (%p80) target = $region17
  $region16: #{_lambda_.14} parent=0 // pred_region
    %83 = vst [vmem:[#allocation2] sm:$0xff] %v73
    %84 = vst [vmem:[#allocation2 + $0x8] sm:$0xff] %v76
  $region17: #{_lambda_.14} parent=0 // pred_fallthru
    _
  %p85 = scmp.gt.s32.totalorder 0, 0
  // Predicated region
  $region18: #{_lambda_.14} parent=0 // pred_check
    %p86 = pneg %p85
  $region19: #{_lambda_.14} parent=0 // pred_check_branch
    %88 = sbr.rel (%p86) target = $region21
  $region20: #{_lambda_.14} parent=0 // pred_region
    %v89 = vld [vmem:[#allocation2] sm:$0xff]
    %v90 = vld [vmem:[#allocation2 + $0x8] sm:$0xff]
    %v91 = vadd.f32 %v89, %v73
    %v92 = vadd.f32 %v90, %v76
    %93 = vst [vmem:[#allocation2] sm:$0xff] %v91
    %94 = vst [vmem:[#allocation2 + $0x8] sm:$0xff] %v92
  $region21: #{_lambda_.14} parent=0 // pred_fallthru
    _
  // Predicated region
  $region22: #{_lambda_.14} parent=0 // pred_check
    %p95 = pneg %p79
  $region23: #{_lambda_.14} parent=0 // pred_check_branch
    %97 = sbr.rel (%p95) target = $region25
  $region24: #{_lambda_.14} parent=0 // pred_region
    %v98 = vld [vmem:[#allocation2] sm:$0xff]
    %v99 = vld [vmem:[#allocation2 + $0x8] sm:$0xff]
    %v100 = vld [vmem:[%s2] sm:$0x1]
    %v102 = vlaneseq
    %v103 = vshrl.u32 %v102, 7
    %v104 = vsub.s32 0, %v103
    %v105 = vrot.slane %v100, %v104
    %v107 = vadd.f32 %v98, %v105
    %v108 = vadd.f32 %v99, %v105
    %109 = vst [vmem:[%s3] sm:$0xff] %v107
    %110 = vst [vmem:[%s3 + $0x8] sm:$0xff] %v108
  $region25: #{_lambda_.14} parent=0 // pred_fallthru
    _
  // Predicated region
  $region26: #{_lambda_.14} parent=0 // pred_check
    _
  $region27: #{_lambda_.14} parent=0 // pred_check_branch
    %112 = sbr.rel (0) target = $region29
  $region28: #{_lambda_.14} parent=0 // pred_region
    _
  $region29: #{_lambda_.14} parent=0 // pred_fallthru
    _
  // Predicated region
  $region30: #{_lambda_.14} parent=0 // pred_check
    _
  $region31: #{_lambda_.14} parent=0 // pred_check_branch
    %114 = sbr.rel (0) target = $region33
  $region32: #{_lambda_.14} parent=0 // pred_region
    _
  $region33: #{_lambda_.14} parent=0 // pred_fallthru
    _

// kernel: _lambda_.13
$region0: #{_lambda_.13}
  #allocation0 [shape = 'u32[]', space=smem, size = 0x4, offset = 0x4, fixed_abs, tag = 'smem constant byte address 0x4 - core index']
  #allocation1 [shape = 'u32[144,128]{1,0:T(1,128)}', space=vmem, size = 0x12000, scoped, tag = 'internal scratch']
  #allocation2 [shape = 'f32[16,32]{1,0:T(8,128)}', space=vmem, size = 0x2000, scoped, tag = 'scratch operand']
  %s0 = inlined_call_operand.vmem [shape: f32[16,32], index: 0, kind: input, shape index: {}]
  %s1 = inlined_call_operand.vmem [shape: bf16[32,32], index: 1, kind: input, shape index: {}]
  %s2 = inlined_call_operand.vmem [shape: f32[1,32], index: 2, kind: input, shape index: {}]
  %s3 = inlined_call_operand.vmem [shape: f32[16,32], index: 3, kind: input, shape index: {}]
  %s4 = inlined_call_operand.vmem [shape: f32[1,32], index: 4, kind: input, shape index: {}]
  %s5 = inlined_call_operand.vmem [shape: f32[1,32], index: 5, kind: input, shape index: {}]
  %s6 = inlined_call_operand.vmem [shape: f32[16,32], index: 6, kind: output, shape index: {}]
  %s7 = sld [smem:[#allocation0]]
  $region46: #{_lambda_.13} parent=0
    _
  %s9 = ssub.s32 1, %s7
  %s10 = scalar_select 0, %s9, %s7
  // Predicated region
  $region2: #{_lambda_.13} parent=0 // pred_check
    _
  $region3: #{_lambda_.13} parent=0 // pred_check_branch
    %12 = sbr.rel (0) target = $region5
  $region4: #{_lambda_.13} parent=0 // pred_region
    _
  $region5: #{_lambda_.13} parent=0 // pred_fallthru
    _
  // Predicated region
  $region6: #{_lambda_.13} parent=0 // pred_check
    _
  $region7: #{_lambda_.13} parent=0 // pred_check_branch
    %14 = sbr.rel (0) target = $region9
  $region8: #{_lambda_.13} parent=0 // pred_region
    _
  $region9: #{_lambda_.13} parent=0 // pred_fallthru
    _
  // Predicated region
  $region10: #{_lambda_.13} parent=0 // pred_check
    _
  $region11: #{_lambda_.13} parent=0 // pred_check_branch
    %16 = sbr.rel (0) target = $region13
  $region12: #{_lambda_.13} parent=0 // pred_region
    _
  $region13: #{_lambda_.13} parent=0 // pred_fallthru
    _
  // Predicated region
  $region14: #{_lambda_.13} parent=0 // pred_check
    _
  $region15: #{_lambda_.13} parent=0 // pred_check_branch
    %18 = sbr.rel (0) target = $region17
  $region16: #{_lambda_.13} parent=0 // pred_region
    _
  $region17: #{_lambda_.13} parent=0 // pred_fallthru
    _
  // Predicated region
  $region18: #{_lambda_.13} parent=0 // pred_check
    _
  $region19: #{_lambda_.13} parent=0 // pred_check_branch
    %20 = sbr.rel (0) target = $region21
  $region20: #{_lambda_.13} parent=0 // pred_region
    _
  $region21: #{_lambda_.13} parent=0 // pred_fallthru
    _
  // Predicated region
  $region22: #{_lambda_.13} parent=0 // pred_check
    _
  $region23: #{_lambda_.13} parent=0 // pred_check_branch
    %22 = sbr.rel (0) target = $region25
  $region24: #{_lambda_.13} parent=0 // pred_region
    _
  $region25: #{_lambda_.13} parent=0 // pred_fallthru
    _
  %v24 = vld [vmem:[%s0] sm:$0xff]
  %v25 = vld [vmem:[%s0 + $0x8] sm:$0xff]
  %v26 = vpack.c.bf16 %v25, %v24
  %v27 = vld [vmem:[%s1] sm:$0xf]
  %v28 = vld [vmem:[%s1 + $0x4] sm:$0xf]
  %v29 = vld [vmem:[%s1 + $0x8] sm:$0xf]
  %v30 = vld [vmem:[%s1 + $0xc] sm:$0xf]
  %v35 = vunpack.c.l.b16 %v27
  %v36 = vunpack.c.l.b16 %v28
  %v37 = vunpack.c.l.b16 %v29
  %v38 = vunpack.c.l.b16 %v30
  %v39 = vpack.c.b16 %v36, %v35
  %v40 = vpack.c.b16 %v38, %v37
  %vm43 = vcmask 261120
  %v45 = vsel %vm43, %v26, 0
  %47 = vmatprep.subr.bf16.mxu0 0
  %48 = vmatpush1.bf16.msra.mxu0 0
  %49 = vmatprep.subr.bf16.mxu0 0
  %50 = vmatpush1.bf16.msra.mxu0 0
  %51 = vmatprep.subr.bf16.mxu0 0
  %52 = vmatpush1.bf16.msra.mxu0 0
  %53 = vmatprep.subr.bf16.mxu0 0
  %54 = vmatpush1.bf16.msra.mxu0 0
  %55 = vmatprep.subr.bf16.mxu0 0
  %56 = vmatpush1.bf16.msra.mxu0 0
  %57 = vmatprep.subr.bf16.mxu0 0
  %58 = vmatpush1.bf16.msra.mxu0 0
  %59 = vmatprep.subr.bf16.mxu0 0
  %60 = vmatpush1.bf16.msra.mxu0 %v40
  %61 = vmatprep.subr.bf16.mxu0 0
  %62 = vmatpush1.bf16.msra.mxu0 %v39
  %63 = vmatprep.subr.bf16.mxu0 0
  %64 = vmatpush2.bf16.msra.mxu0 0
  %65 = vmatprep.subr.bf16.mxu0 0
  %66 = vmatpush2.bf16.msra.mxu0 0
  %67 = vmatprep.subr.bf16.mxu0 0
  %68 = vmatpush2.bf16.msra.mxu0 0
  %69 = vmatprep.subr.bf16.mxu0 0
  %70 = vmatpush2.bf16.msra.mxu0 0
  %71 = vmatprep.subr.bf16.mxu0 0
  %72 = vmatpush2.bf16.msra.mxu0 0
  %73 = vmatprep.subr.bf16.mxu0 0
  %74 = vmatpush2.bf16.msra.mxu0 0
  %75 = vmatprep.subr.bf16.mxu0 0
  %76 = vmatpush2.bf16.msra.mxu0 0
  %77 = vmatprep.subr.bf16.mxu0 0
  %78 = vmatpush2.bf16.msra.mxu0 0
  %79 = vmatprep.mubr.bf16.mxu0 0
  %80 = vmatmul.mubr.bf16.gmra.mxu0 %v45
  %v81 = vpop.f32.mrf.mxu0
  %v82 = vadd.f32 0.0, %v81
  %v83 = vpop.f32.mrf.mxu0
  %v84 = vpop.f32.mrf.mxu0
  %v85 = vadd.f32 0.0, %v84
  %v86 = vpop.f32.mrf.mxu0
  %87 = vdwg.mxu0
  %p88 = scmp.eq.s32.totalorder 0, 0
  // Predicated region
  $region26: #{_lambda_.13} parent=0 // pred_check
    %p89 = pneg %p88
  $region27: #{_lambda_.13} parent=0 // pred_check_branch
    %91 = sbr.rel (%p89) target = $region29
  $region28: #{_lambda_.13} parent=0 // pred_region
    %92 = vst.msk [vmem:[#allocation2] sm:$0xff] %vm43, %v82
    %93 = vst.msk [vmem:[#allocation2 + $0x8] sm:$0xff] %vm43, %v85
  $region29: #{_lambda_.13} parent=0 // pred_fallthru
    _
  %p94 = scmp.gt.s32.totalorder 0, 0
  // Predicated region
  $region30: #{_lambda_.13} parent=0 // pred_check
    %p95 = pneg %p94
  $region31: #{_lambda_.13} parent=0 // pred_check_branch
    %97 = sbr.rel (%p95) target = $region33
  $region32: #{_lambda_.13} parent=0 // pred_region
    %v98 = vld [vmem:[#allocation2] sm:$0xff]
    %v99 = vld [vmem:[#allocation2 + $0x8] sm:$0xff]
    %v100 = vadd.f32 %v98, %v82
    %v101 = vadd.f32 %v99, %v85
    %102 = vst.msk [vmem:[#allocation2] sm:$0xff] %vm43, %v100
    %103 = vst.msk [vmem:[#allocation2 + $0x8] sm:$0xff] %vm43, %v101
  $region33: #{_lambda_.13} parent=0 // pred_fallthru
    _
  // Predicated region
  $region34: #{_lambda_.13} parent=0 // pred_check
    %p104 = pneg %p88
  $region35: #{_lambda_.13} parent=0 // pred_check_branch
    %106 = sbr.rel (%p104) target = $region37
  $region36: #{_lambda_.13} parent=0 // pred_region
    %v107 = vld [vmem:[#allocation2] sm:$0xff]
    %v108 = vld [vmem:[#allocation2 + $0x8] sm:$0xff]
    %v109 = vld [vmem:[%s2] sm:$0x1]
    %v111 = vlaneseq
    %v112 = vshrl.u32 %v111, 7
    %v113 = vsub.s32 0, %v112
    %v114 = vrot.slane %v109, %v113
    %v116 = vadd.f32 %v107, %v114
    %v117 = vadd.f32 %v108, %v114
    %v118 = vld [vmem:[%s3] sm:$0xff]
    %v119 = vld [vmem:[%s3 + $0x8] sm:$0xff]
    %v120 = vadd.f32 %v116, %v118
    %v121 = vadd.f32 %v117, %v119
    %v122 = vld [vmem:[%s4] sm:$0x1]
    %v123 = vld [vmem:[%s5] sm:$0x1]
    %v124 = vsel %vm43, %v120, 0.0
    %125 = vadd.xlane.f32.xlu0 %v124
    %v126 = vpop.xlane.xlu0 %125
    %v127 = vsel %vm43, %v121, 0.0
    %128 = vadd.xlane.f32.xlu0 %v127
    %v129 = vpop.xlane.xlu0 %128
    %v130 = vrcp.pop 32.0
    %v131 = vmul.f32 %v126, %v130
    %v132 = vmul.f32 %v129, %v130
    %v133 = vsub.f32 %v120, %v131
    %v134 = vsub.f32 %v121, %v132
    %v135 = vmul.f32 %v133, %v133
    %v136 = vmul.f32 %v134, %v134
    %v137 = vsel %vm43, %v135, 0.0
    %138 = vadd.xlane.f32.xlu0 %v137
    %v139 = vpop.xlane.xlu0 %138
    %v140 = vsel %vm43, %v136, 0.0
    %141 = vadd.xlane.f32.xlu0 %v140
    %v142 = vpop.xlane.xlu0 %141
    %v143 = vmul.f32 %v139, %v130
    %v144 = vmul.f32 %v142, %v130
    %v145 = vadd.f32 %v143, 1e-05
    %v146 = vadd.f32 %v144, 1e-05
    %v147 = vrsqrt.pop %v145
    %v148 = vrsqrt.pop %v146
    %v149 = vmul.f32 %v133, %v147
    %v150 = vmul.f32 %v134, %v148
    %v152 = vlaneseq
    %v153 = vshrl.u32 %v152, 7
    %v154 = vsub.s32 0, %v153
    %v155 = vrot.slane %v122, %v154
    %v157 = vmul.f32 %v149, %v155
    %v158 = vmul.f32 %v150, %v155
    %v160 = vlaneseq
    %v161 = vshrl.u32 %v160, 7
    %v162 = vsub.s32 0, %v161
    %v163 = vrot.slane %v123, %v162
    %v165 = vadd.f32 %v157, %v163
    %v166 = vadd.f32 %v158, %v163
    %167 = vst.msk [vmem:[%s6] sm:$0xff] %vm43, %v165
    %168 = vst.msk [vmem:[%s6 + $0x8] sm:$0xff] %vm43, %v166
  $region37: #{_lambda_.13} parent=0 // pred_fallthru
    _
  // Predicated region
  $region38: #{_lambda_.13} parent=0 // pred_check
    _
  $region39: #{_lambda_.13} parent=0 // pred_check_branch
    %170 = sbr.rel (0) target = $region41
  $region40: #{_lambda_.13} parent=0 // pred_region
    _
  $region41: #{_lambda_.13} parent=0 // pred_fallthru
    _
  // Predicated region
  $region42: #{_lambda_.13} parent=0 // pred_check
    _
  $region43: #{_lambda_.13} parent=0 // pred_check_branch
    %172 = sbr.rel (0) target = $region45
  $region44: #{_lambda_.13} parent=0 // pred_region
    _
  $region45: #{_lambda_.13} parent=0 // pred_fallthru
    _

// kernel: _lambda_.15
$region0: #{_lambda_.15}
  #allocation0 [shape = 'u32[]', space=smem, size = 0x4, offset = 0x4, fixed_abs, tag = 'smem constant byte address 0x4 - core index']
  #allocation1 [shape = 'u32[144,128]{1,0:T(1,128)}', space=vmem, size = 0x12000, scoped, tag = 'internal scratch']
  #allocation2 [shape = 'f32[16,32]{1,0:T(8,128)}', space=vmem, size = 0x2000, scoped, tag = 'scratch operand']
  %s0 = inlined_call_operand.vmem [shape: f32[16,128], index: 0, kind: input, shape index: {}]
  %s1 = inlined_call_operand.vmem [shape: bf16[128,32], index: 1, kind: input, shape index: {}]
  %s2 = inlined_call_operand.vmem [shape: f32[1,32], index: 2, kind: input, shape index: {}]
  %s3 = inlined_call_operand.vmem [shape: f32[1,32], index: 3, kind: input, shape index: {}]
  %s4 = inlined_call_operand.vmem [shape: f32[1,32], index: 4, kind: input, shape index: {}]
  %s5 = inlined_call_operand.vmem [shape: f32[16,32], index: 5, kind: output, shape index: {}]
  %s6 = sld [smem:[#allocation0]]
  $region42: #{_lambda_.15} parent=0
    _
  %s8 = ssub.s32 1, %s6
  %s9 = scalar_select 0, %s8, %s6
  // Predicated region
  $region2: #{_lambda_.15} parent=0 // pred_check
    _
  $region3: #{_lambda_.15} parent=0 // pred_check_branch
    %11 = sbr.rel (0) target = $region5
  $region4: #{_lambda_.15} parent=0 // pred_region
    _
  $region5: #{_lambda_.15} parent=0 // pred_fallthru
    _
  // Predicated region
  $region6: #{_lambda_.15} parent=0 // pred_check
    _
  $region7: #{_lambda_.15} parent=0 // pred_check_branch
    %13 = sbr.rel (0) target = $region9
  $region8: #{_lambda_.15} parent=0 // pred_region
    _
  $region9: #{_lambda_.15} parent=0 // pred_fallthru
    _
  // Predicated region
  $region10: #{_lambda_.15} parent=0 // pred_check
    _
  $region11: #{_lambda_.15} parent=0 // pred_check_branch
    %15 = sbr.rel (0) target = $region13
  $region12: #{_lambda_.15} parent=0 // pred_region
    _
  $region13: #{_lambda_.15} parent=0 // pred_fallthru
    _
  // Predicated region
  $region14: #{_lambda_.15} parent=0 // pred_check
    _
  $region15: #{_lambda_.15} parent=0 // pred_check_branch
    %17 = sbr.rel (0) target = $region17
  $region16: #{_lambda_.15} parent=0 // pred_region
    _
  $region17: #{_lambda_.15} parent=0 // pred_fallthru
    _
  // Predicated region
  $region18: #{_lambda_.15} parent=0 // pred_check
    _
  $region19: #{_lambda_.15} parent=0 // pred_check_branch
    %19 = sbr.rel (0) target = $region21
  $region20: #{_lambda_.15} parent=0 // pred_region
    _
  $region21: #{_lambda_.15} parent=0 // pred_fallthru
    _
  %v21 = vld [vmem:[%s0] sm:$0xff]
  %v22 = vld [vmem:[%s0 + $0x8] sm:$0xff]
  %v23 = vpack.c.bf16 %v22, %v21
  %v24 = vld [vmem:[%s1] sm:$0xf]
  %v25 = vld [vmem:[%s1 + $0x4] sm:$0xf]
  %v26 = vld [vmem:[%s1 + $0x8] sm:$0xf]
  %v27 = vld [vmem:[%s1 + $0xc] sm:$0xf]
  %v28 = vld [vmem:[%s1 + $0x10] sm:$0xf]
  %v29 = vld [vmem:[%s1 + $0x14] sm:$0xf]
  %v30 = vld [vmem:[%s1 + $0x18] sm:$0xf]
  %v31 = vld [vmem:[%s1 + $0x1c] sm:$0xf]
  %v32 = vld [vmem:[%s1 + $0x20] sm:$0xf]
  %v33 = vld [vmem:[%s1 + $0x24] sm:$0xf]
  %v34 = vld [vmem:[%s1 + $0x28] sm:$0xf]
  %v35 = vld [vmem:[%s1 + $0x2c] sm:$0xf]
  %v36 = vld [vmem:[%s1 + $0x30] sm:$0xf]
  %v37 = vld [vmem:[%s1 + $0x34] sm:$0xf]
  %v38 = vld [vmem:[%s1 + $0x38] sm:$0xf]
  %v39 = vld [vmem:[%s1 + $0x3c] sm:$0xf]
  %v56 = vunpack.c.l.b16 %v24
  %v57 = vunpack.c.l.b16 %v25
  %v58 = vunpack.c.l.b16 %v26
  %v59 = vunpack.c.l.b16 %v27
  %v60 = vunpack.c.l.b16 %v28
  %v61 = vunpack.c.l.b16 %v29
  %v62 = vunpack.c.l.b16 %v30
  %v63 = vunpack.c.l.b16 %v31
  %v64 = vunpack.c.l.b16 %v32
  %v65 = vunpack.c.l.b16 %v33
  %v66 = vunpack.c.l.b16 %v34
  %v67 = vunpack.c.l.b16 %v35
  %v68 = vunpack.c.l.b16 %v36
  %v69 = vunpack.c.l.b16 %v37
  %v70 = vunpack.c.l.b16 %v38
  %v71 = vunpack.c.l.b16 %v39
  %v72 = vpack.c.b16 %v57, %v56
  %v73 = vpack.c.b16 %v59, %v58
  %v74 = vpack.c.b16 %v61, %v60
  %v75 = vpack.c.b16 %v63, %v62
  %v76 = vpack.c.b16 %v65, %v64
  %v77 = vpack.c.b16 %v67, %v66
  %v78 = vpack.c.b16 %v69, %v68
  %v79 = vpack.c.b16 %v71, %v70
  %88 = vmatprep.subr.bf16.mxu0 0
  %89 = vmatpush1.bf16.msra.mxu0 %v79
  %90 = vmatprep.subr.bf16.mxu0 0
  %91 = vmatpush1.bf16.msra.mxu0 %v78
  %92 = vmatprep.subr.bf16.mxu0 0
  %93 = vmatpush1.bf16.msra.mxu0 %v77
  %94 = vmatprep.subr.bf16.mxu0 0
  %95 = vmatpush1.bf16.msra.mxu0 %v76
  %96 = vmatprep.subr.bf16.mxu0 0
  %97 = vmatpush1.bf16.msra.mxu0 %v75
  %98 = vmatprep.subr.bf16.mxu0 0
  %99 = vmatpush1.bf16.msra.mxu0 %v74
  %100 = vmatprep.subr.bf16.mxu0 0
  %101 = vmatpush1.bf16.msra.mxu0 %v73
  %102 = vmatprep.subr.bf16.mxu0 0
  %103 = vmatpush1.bf16.msra.mxu0 %v72
  %104 = vmatprep.subr.bf16.mxu0 0
  %105 = vmatpush2.bf16.msra.mxu0 0
  %106 = vmatprep.subr.bf16.mxu0 0
  %107 = vmatpush2.bf16.msra.mxu0 0
  %108 = vmatprep.subr.bf16.mxu0 0
  %109 = vmatpush2.bf16.msra.mxu0 0
  %110 = vmatprep.subr.bf16.mxu0 0
  %111 = vmatpush2.bf16.msra.mxu0 0
  %112 = vmatprep.subr.bf16.mxu0 0
  %113 = vmatpush2.bf16.msra.mxu0 0
  %114 = vmatprep.subr.bf16.mxu0 0
  %115 = vmatpush2.bf16.msra.mxu0 0
  %116 = vmatprep.subr.bf16.mxu0 0
  %117 = vmatpush2.bf16.msra.mxu0 0
  %118 = vmatprep.subr.bf16.mxu0 0
  %119 = vmatpush2.bf16.msra.mxu0 0
  %120 = vmatprep.mubr.bf16.mxu0 0
  %121 = vmatmul.mubr.bf16.gmra.mxu0 %v23
  %v122 = vpop.f32.mrf.mxu0
  %v123 = vadd.f32 0.0, %v122
  %v124 = vpop.f32.mrf.mxu0
  %v125 = vpop.f32.mrf.mxu0
  %v126 = vadd.f32 0.0, %v125
  %v127 = vpop.f32.mrf.mxu0
  %128 = vdwg.mxu0
  %p129 = scmp.eq.s32.totalorder 0, 0
  // Predicated region
  $region22: #{_lambda_.15} parent=0 // pred_check
    %p130 = pneg %p129
  $region23: #{_lambda_.15} parent=0 // pred_check_branch
    %132 = sbr.rel (%p130) target = $region25
  $region24: #{_lambda_.15} parent=0 // pred_region
    %vm133 = vcmask 261120
    %134 = vst.msk [vmem:[#allocation2] sm:$0xff] %vm133, %v123
    %135 = vst.msk [vmem:[#allocation2 + $0x8] sm:$0xff] %vm133, %v126
  $region25: #{_lambda_.15} parent=0 // pred_fallthru
    _
  %p136 = scmp.gt.s32.totalorder 0, 0
  // Predicated region
  $region26: #{_lambda_.15} parent=0 // pred_check
    %p137 = pneg %p136
  $region27: #{_lambda_.15} parent=0 // pred_check_branch
    %139 = sbr.rel (%p137) target = $region29
  $region28: #{_lambda_.15} parent=0 // pred_region
    %v140 = vld [vmem:[#allocation2] sm:$0xff]
    %v141 = vld [vmem:[#allocation2 + $0x8] sm:$0xff]
    %v142 = vadd.f32 %v140, %v123
    %v143 = vadd.f32 %v141, %v126
    %vm144 = vcmask 261120
    %145 = vst.msk [vmem:[#allocation2] sm:$0xff] %vm144, %v142
    %146 = vst.msk [vmem:[#allocation2 + $0x8] sm:$0xff] %vm144, %v143
  $region29: #{_lambda_.15} parent=0 // pred_fallthru
    _
  // Predicated region
  $region30: #{_lambda_.15} parent=0 // pred_check
    %p147 = pneg %p129
  $region31: #{_lambda_.15} parent=0 // pred_check_branch
    %149 = sbr.rel (%p147) target = $region33
  $region32: #{_lambda_.15} parent=0 // pred_region
    %v150 = vld [vmem:[#allocation2] sm:$0xff]
    %v151 = vld [vmem:[#allocation2 + $0x8] sm:$0xff]
    %v152 = vld [vmem:[%s2] sm:$0x1]
    %v154 = vlaneseq
    %v155 = vshrl.u32 %v154, 7
    %v156 = vsub.s32 0, %v155
    %v157 = vrot.slane %v152, %v156
    %v159 = vadd.f32 %v150, %v157
    %v160 = vadd.f32 %v151, %v157
    %v161 = vmul.f32 %v159, 2.0
    %v162 = vmul.f32 %v160, 2.0
    %v163 = vld [vmem:[%s3] sm:$0x1]
    %v164 = vld [vmem:[%s4] sm:$0x1]
    %vm165 = vcmask 261120
    %v166 = vsel %vm165, %v161, 0.0
    %167 = vadd.xlane.f32.xlu0 %v166
    %v168 = vpop.xlane.xlu0 %167
    %v169 = vsel %vm165, %v162, 0.0
    %170 = vadd.xlane.f32.xlu0 %v169
    %v171 = vpop.xlane.xlu0 %170
    %v172 = vrcp.pop 32.0
    %v173 = vmul.f32 %v168, %v172
    %v174 = vmul.f32 %v171, %v172
    %v175 = vsub.f32 %v161, %v173
    %v176 = vsub.f32 %v162, %v174
    %v177 = vmul.f32 %v175, %v175
    %v178 = vmul.f32 %v176, %v176
    %v179 = vsel %vm165, %v177, 0.0
    %180 = vadd.xlane.f32.xlu0 %v179
    %v181 = vpop.xlane.xlu0 %180
    %v182 = vsel %vm165, %v178, 0.0
    %183 = vadd.xlane.f32.xlu0 %v182
    %v184 = vpop.xlane.xlu0 %183
    %v185 = vmul.f32 %v181, %v172
    %v186 = vmul.f32 %v184, %v172
    %v187 = vadd.f32 %v185, 1e-05
    %v188 = vadd.f32 %v186, 1e-05
    %v189 = vrsqrt.pop %v187
    %v190 = vrsqrt.pop %v188
    %v191 = vmul.f32 %v175, %v189
    %v192 = vmul.f32 %v176, %v190
    %v194 = vlaneseq
    %v195 = vshrl.u32 %v194, 7
    %v196 = vsub.s32 0, %v195
    %v197 = vrot.slane %v163, %v196
    %v199 = vmul.f32 %v191, %v197
    %v200 = vmul.f32 %v192, %v197
    %v202 = vlaneseq
    %v203 = vshrl.u32 %v202, 7
    %v204 = vsub.s32 0, %v203
    %v205 = vrot.slane %v164, %v204
    %v207 = vadd.f32 %v199, %v205
    %v208 = vadd.f32 %v200, %v205
    %209 = vst.msk [vmem:[%s5] sm:$0xff] %vm165, %v207
    %210 = vst.msk [vmem:[%s5 + $0x8] sm:$0xff] %vm165, %v208
  $region33: #{_lambda_.15} parent=0 // pred_fallthru
    _
  // Predicated region
  $region34: #{_lambda_.15} parent=0 // pred_check
    _
  $region35: #{_lambda_.15} parent=0 // pred_check_branch
    %212 = sbr.rel (0) target = $region37
  $region36: #{_lambda_.15} parent=0 // pred_region
    _
  $region37: #{_lambda_.15} parent=0 // pred_fallthru
    _
  // Predicated region
  $region38: #{_lambda_.15} parent=0 // pred_check
    _
  $region39: #{_lambda_.15} parent=0 // pred_check_branch
    %214 = sbr.rel (0) target = $region41
  $region40: #{_lambda_.15} parent=0 // pred_region
    _
  $region41: #{_lambda_.15} parent=0 // pred_fallthru
    _

// kernel: _lambda_.21
$region0: #{_lambda_.21}
  #allocation0 [shape = 'u32[]', space=smem, size = 0x4, offset = 0x4, fixed_abs, tag = 'smem constant byte address 0x4 - core index']
  #allocation1 [shape = 'u32[144,128]{1,0:T(1,128)}', space=vmem, size = 0x12000, scoped, tag = 'internal scratch']
  #allocation2 [shape = 'bf16[16,32]{1,0:T(8,128)(2,1)}', space=vmem, size = 0x1000, scoped, tag = 'scratch operand']
  #allocation3 [shape = 'f32[16,1]{1,0:T(8,128)}', space=vmem, size = 0x2000, scoped, tag = 'scratch operand']
  #allocation4 [shape = 'f32[16,1]{1,0:T(8,128)}', space=vmem, size = 0x2000, scoped, tag = 'scratch operand']
  #allocation5 [shape = 'f32[16,1]{1,0:T(8,128)}', space=vmem, size = 0x2000, scoped, tag = 'scratch operand']
  %s0 = inlined_call_operand.vmem [shape: f32[16,32], index: 0, kind: input, shape index: {}]
  %s1 = inlined_call_operand.vmem [shape: f32[1,32], index: 1, kind: input, shape index: {}]
  %s2 = inlined_call_operand.vmem [shape: f32[1,32], index: 2, kind: input, shape index: {}]
  %s3 = inlined_call_operand.vmem [shape: bf16[32,32], index: 3, kind: input, shape index: {}]
  %s4 = inlined_call_operand.vmem [shape: f32[1,32], index: 4, kind: input, shape index: {}]
  %s5 = inlined_call_operand.hbm [shape: f32[16,32], index: 5, kind: output, shape index: {}]
  %s6 = sld [smem:[#allocation0]]
  $region69: #{_lambda_.21} parent=0
    _
  %s8 = ssub.s32 1, %s6
  %s9 = scalar_select 0, %s8, %s6
  $region1: #{_lambda_.21} parent=0
    #allocation6 [shape = 'u8[8192]{0}', space=vmem, size = 0x2000, scoped, tag = 'output window, operand 0, single buffered']
    #allocation7 [shape = 's32[2]{0}', space=sflag, size = 0x8, scoped, tag = 'scoped memory for _lambda_.21']
    %10 = vsyncpa [#allocation7], 0
    loop: start=0, step=1, limit=4
    $region2: #{_lambda_.21} parent=1 // loop_pre_header
      _
    $region3: #{_lambda_.21} parent=1 // loop_header
      %s12 = sphi 0, %s16
      %p13 = scmp.ge.s32.totalorder %s12, 4
      %s19 = sphi 0, %s38
      %s20 = sphi 0, %s34
      %s21 = sphi 0, %s30
      %s22 = sphi 0, %s19
      %s23 = sphi 0, %s20
      %s24 = sphi 0, %s21
      %s25 = sphi 0, %s22
      %s26 = sphi 0, %s23
      %s27 = sphi 0, %s24
      %s41 = sphi 0, %s43
      %s44 = sphi 0, %s41
      %s45 = sphi 0, %s44
      %s61 = sphi 0, %s45
      %s65 = sphi 0, %s65
      %s67 = sphi 0, %s65
      %s68 = sphi 0, %s67
      %s82 = sphi 0, %s68
      %s86 = sphi 0, %s86
      %s88 = sphi 0, %s86
      %s89 = sphi 0, %s88
      %s103 = sphi 0, %s89
      %s109 = sphi 0, %s111
      %s112 = sphi 0, %s109
      %s113 = sphi 0, %s112
      %s129 = sphi 0, %s113
      %s135 = sphi 0, %s137
      %s138 = sphi 0, %s135
      %s139 = sphi 0, %s138
      %s155 = sphi 0, %s139
      %s163 = sphi 0, %s165
      %s166 = sphi 0, %s163
      %s167 = sphi 0, %s166
      %s183 = sphi 0, %s167
    $region4: #{_lambda_.21} parent=1 // loop_header_branch
      %15 = sbr.rel (%p13) target = $region8
    $region5: #{_lambda_.21} parent=1 // loop_body
      %s17 = ssub.s32 %s12, 1
      %s18 = ssub.s32 %s12, 2
      %s28 = sadd.s32 1, %s21
      %p29 = scmp.ge.s32.totalorder %s28, 1
      %s30 = scalar_select %p29, 0, %s28
      %s31 = sadd.s32 1, %s20
      %s32 = scalar_select %p29, %s31, %s20
      %p33 = scmp.ge.s32.totalorder %s32, 2
      %s34 = scalar_select %p33, 0, %s32
      %s35 = sadd.s32 1, %s19
      %s36 = scalar_select %p33, %s35, %s19
      %p37 = scmp.ge.s32.totalorder %s36, 1
      %s38 = scalar_select %p37, 0, %s36
      %s39 = ssub.s32 %s19, %s38
      %p40 = scmp.eq.s32.totalorder %s39, 0
      %s42 = sadd.s32 %s41, 1
      %s43 = scalar_select %p40, %s41, %s42
      %p46 = pneg %p40
      %p47 = scmp.eq.s32.totalorder %s12, 1
      %p48 = por %p46, %p47
      %p49 = scmp.ne.s32.totalorder %s41, %s44
      %p50 = scmp.eq.s32.totalorder %s12, 0
      %p51 = por %p49, %p50
      %p52 = scmp.ne.s32.totalorder %s41, %s44
      %p53 = scmp.eq.s32.totalorder %s17, 1
      %p54 = por %p52, %p53
      %p55 = scmp.ne.s32.totalorder %s44, %s45
      %p56 = scmp.eq.s32.totalorder %s17, 0
      %p57 = por %p55, %p56
      %p58 = scmp.ne.s32.totalorder %s44, %s45
      %p59 = scmp.eq.s32.totalorder %s18, 1
      %p60 = por %p58, %p59
      %p62 = scmp.ne.s32.totalorder %s45, %s61
      %p63 = scmp.eq.s32.totalorder %s18, 0
      %p64 = por %p62, %p63
      %s66 = sadd.s32 %s65, 1
      %p69 = scmp.eq.s32.totalorder %s12, 1
      %p70 = scmp.ne.s32.totalorder %s65, %s67
      %p71 = scmp.eq.s32.totalorder %s12, 0
      %p72 = por %p70, %p71
      %p73 = scmp.ne.s32.totalorder %s65, %s67
      %p74 = scmp.eq.s32.totalorder %s17, 1
      %p75 = por %p73, %p74
      %p76 = scmp.ne.s32.totalorder %s67, %s68
      %p77 = scmp.eq.s32.totalorder %s17, 0
      %p78 = por %p76, %p77
      %p79 = scmp.ne.s32.totalorder %s67, %s68
      %p80 = scmp.eq.s32.totalorder %s18, 1
      %p81 = por %p79, %p80
      %p83 = scmp.ne.s32.totalorder %s68, %s82
      %p84 = scmp.eq.s32.totalorder %s18, 0
      %p85 = por %p83, %p84
      %s87 = sadd.s32 %s86, 1
      %p90 = scmp.eq.s32.totalorder %s12, 1
      %p91 = scmp.ne.s32.totalorder %s86, %s88
      %p92 = scmp.eq.s32.totalorder %s12, 0
      %p93 = por %p91, %p92
      %p94 = scmp.ne.s32.totalorder %s86, %s88
      %p95 = scmp.eq.s32.totalorder %s17, 1
      %p96 = por %p94, %p95
      %p97 = scmp.ne.s32.totalorder %s88, %s89
      %p98 = scmp.eq.s32.totalorder %s17, 0
      %p99 = por %p97, %p98
      %p100 = scmp.ne.s32.totalorder %s88, %s89
      %p101 = scmp.eq.s32.totalorder %s18, 1
      %p102 = por %p100, %p101
      %p104 = scmp.ne.s32.totalorder %s89, %s103
      %p105 = scmp.eq.s32.totalorder %s18, 0
      %p106 = por %p104, %p105
      %s107 = ssub.s32 %s21, %s30
      %p108 = scmp.eq.s32.totalorder %s107, 0
      %s110 = sadd.s32 %s109, 1
      %s111 = scalar_select %p108, %s109, %s110
      %p114 = pneg %p108
      %p115 = scmp.eq.s32.totalorder %s12, 1
      %p116 = por %p114, %p115
      %p117 = scmp.ne.s32.totalorder %s109, %s112
      %p118 = scmp.eq.s32.totalorder %s12, 0
      %p119 = por %p117, %p118
      %p120 = scmp.ne.s32.totalorder %s109, %s112
      %p121 = scmp.eq.s32.totalorder %s17, 1
      %p122 = por %p120, %p121
      %p123 = scmp.ne.s32.totalorder %s112, %s113
      %p124 = scmp.eq.s32.totalorder %s17, 0
      %p125 = por %p123, %p124
      %p126 = scmp.ne.s32.totalorder %s112, %s113
      %p127 = scmp.eq.s32.totalorder %s18, 1
      %p128 = por %p126, %p127
      %p130 = scmp.ne.s32.totalorder %s113, %s129
      %p131 = scmp.eq.s32.totalorder %s18, 0
      %p132 = por %p130, %p131
      %s133 = ssub.s32 %s21, %s30
      %p134 = scmp.eq.s32.totalorder %s133, 0
      %s136 = sadd.s32 %s135, 1
      %s137 = scalar_select %p134, %s135, %s136
      %p140 = pneg %p134
      %p141 = scmp.eq.s32.totalorder %s12, 1
      %p142 = por %p140, %p141
      %p143 = scmp.ne.s32.totalorder %s135, %s138
      %p144 = scmp.eq.s32.totalorder %s12, 0
      %p145 = por %p143, %p144
      %p146 = scmp.ne.s32.totalorder %s135, %s138
      %p147 = scmp.eq.s32.totalorder %s17, 1
      %p148 = por %p146, %p147
      %p149 = scmp.ne.s32.totalorder %s138, %s139
      %p150 = scmp.eq.s32.totalorder %s17, 0
      %p151 = por %p149, %p150
      %p152 = scmp.ne.s32.totalorder %s138, %s139
      %p153 = scmp.eq.s32.totalorder %s18, 1
      %p154 = por %p152, %p153
      %p156 = scmp.ne.s32.totalorder %s139, %s155
      %p157 = scmp.eq.s32.totalorder %s18, 0
      %p158 = por %p156, %p157
      %s159 = ssub.s32 %s19, %s38
      %s160 = ssub.s32 %s21, %s30
      %s161 = sor.u32 %s159, %s160
      %p162 = scmp.eq.s32.totalorder %s161, 0
      %s164 = sadd.s32 %s163, 1
      %s165 = scalar_select %p162, %s163, %s164
      %p168 = pneg %p162
      %p169 = scmp.eq.s32.totalorder %s12, 1
      %p170 = por %p168, %p169
      %p171 = scmp.ne.s32.totalorder %s163, %s166
      %p172 = scmp.eq.s32.totalorder %s12, 0
      %p173 = por %p171, %p172
      %p174 = scmp.ne.s32.totalorder %s163, %s166
      %p175 = scmp.eq.s32.totalorder %s17, 1
      %p176 = por %p174, %p175
      %p177 = scmp.ne.s32.totalorder %s166, %s167
      %p178 = scmp.eq.s32.totalorder %s17, 0
      %p179 = por %p177, %p178
      %p180 = scmp.ne.s32.totalorder %s166, %s167
      %p181 = scmp.eq.s32.totalorder %s18, 1
      %p182 = por %p180, %p181
      %p184 = scmp.ne.s32.totalorder %s167, %s183
      %p185 = scmp.eq.s32.totalorder %s18, 0
      %p186 = por %p184, %p185
      %p187 = scmp.le.s32.totalorder 1, %s12
      %p188 = scmp.lt.s32.totalorder %s12, 3
      %p189 = pnand %p187, %p188
      %p190 = pneg %p189
      // Predicated region
      $region9: #{_lambda_.21} parent=5 // pred_check
        _
      $region10: #{_lambda_.21} parent=5 // pred_check_branch
        %192 = sbr.rel (%p189) target = $region12
      $region11: #{_lambda_.21} parent=5 // pred_region
        %s193 = ssub.s32 %s12, 1
        // Predicated region
        $region13: #{_lambda_.21} parent=11 // pred_check
          %p194 = pneg %p57
        $region14: #{_lambda_.21} parent=11 // pred_check_branch
          %196 = sbr.rel (%p194) target = $region16
        $region15: #{_lambda_.21} parent=11 // pred_region
          %s197 = smul.u32 2, %s22
          %p198 = scmp.lt.s32.totalorder %s197, 1
          %s199 = scalar_select %p198, %s197, 1
          %s200 = smul.addr %s199, 8
          %s201 = scalar_lea.vmem %s0, %s200
          %s202 = smul.u32 2, %s22
        $region16: #{_lambda_.21} parent=11 // pred_fallthru
          _
        // Predicated region
        $region17: #{_lambda_.21} parent=11 // pred_check
          %p203 = pneg %p78
        $region18: #{_lambda_.21} parent=11 // pred_check_branch
          %205 = sbr.rel (%p203) target = $region20
        $region19: #{_lambda_.21} parent=11 // pred_region
          _
        $region20: #{_lambda_.21} parent=11 // pred_fallthru
          _
        // Predicated region
        $region21: #{_lambda_.21} parent=11 // pred_check
          %p206 = pneg %p99
        $region22: #{_lambda_.21} parent=11 // pred_check_branch
          %208 = sbr.rel (%p206) target = $region24
        $region23: #{_lambda_.21} parent=11 // pred_region
          _
        $region24: #{_lambda_.21} parent=11 // pred_fallthru
          _
        // Predicated region
        $region25: #{_lambda_.21} parent=11 // pred_check
          %p209 = pneg %p125
        $region26: #{_lambda_.21} parent=11 // pred_check_branch
          %211 = sbr.rel (%p209) target = $region28
        $region27: #{_lambda_.21} parent=11 // pred_region
          %p212 = scmp.lt.s32.totalorder %s24, 0
          %s213 = scalar_select %p212, %s24, 0
          %s214 = smul.addr %s213, 4
          %s215 = scalar_lea.vmem %s3, %s214
        $region28: #{_lambda_.21} parent=11 // pred_fallthru
          _
        // Predicated region
        $region29: #{_lambda_.21} parent=11 // pred_check
          %p216 = pneg %p151
        $region30: #{_lambda_.21} parent=11 // pred_check_branch
          %218 = sbr.rel (%p216) target = $region32
        $region31: #{_lambda_.21} parent=11 // pred_region
          %p219 = scmp.lt.s32.totalorder %s24, 0
          %s220 = scalar_select %p219, %s24, 0
          %s221 = scalar_lea.vmem %s4, %s220
        $region32: #{_lambda_.21} parent=11 // pred_fallthru
          _
      $region12: #{_lambda_.21} parent=5 // pred_fallthru
        _
      %p222 = scmp.lt.s32.totalorder %s12, 2
      // Predicated region
      $region33: #{_lambda_.21} parent=5 // pred_check
        %p223 = pneg %p222
      $region34: #{_lambda_.21} parent=5 // pred_check_branch
        %225 = sbr.rel (%p223) target = $region36
      $region35: #{_lambda_.21} parent=5 // pred_region
        _
      $region36: #{_lambda_.21} parent=5 // pred_fallthru
        _
      %p226 = scmp.le.s32.totalorder 1, %s12
      %p227 = scmp.lt.s32.totalorder %s12, 3
      %p228 = pnand %p226, %p227
      %p229 = pneg %p228
      // Predicated region
      $region37: #{_lambda_.21} parent=5 // pred_check
        _
      $region38: #{_lambda_.21} parent=5 // pred_check_branch
        %231 = sbr.rel (%p228) target = $region40
      $region39: #{_lambda_.21} parent=5 // pred_region
        %s232 = ssub.s32 %s12, 1
        %s233 = smul.u32 2, %s22
        %p234 = scmp.lt.s32.totalorder %s233, 1
        %s235 = scalar_select %p234, %s233, 1
        %s236 = smul.addr %s235, 8
        %s237 = scalar_lea.vmem %s0, %s236
        %p238 = pneg %p57
        %p239 = pneg %p54
        %p240 = pneg %p78
        %p241 = pneg %p75
        %p242 = pneg %p99
        %p243 = pneg %p96
        %p244 = scmp.lt.s32.totalorder %s24, 0
        %s245 = scalar_select %p244, %s24, 0
        %s246 = smul.addr %s245, 4
        %s247 = scalar_lea.vmem %s3, %s246
        %p248 = pneg %p125
        %p249 = pneg %p122
        %p250 = scmp.lt.s32.totalorder %s24, 0
        %s251 = scalar_select %p250, %s24, 0
        %s252 = scalar_lea.vmem %s4, %s251
        %p253 = pneg %p151
        %p254 = pneg %p148
        %p255 = pneg %p179
        %p256 = pneg %p176
        %s257 = smul.u32 2, %s22
        %p258 = scmp.lt.s32.totalorder %s257, 1
        %s259 = scalar_select %p258, %s257, 1
        %s260 = smul.addr %s259, 8
        %s261 = scalar_lea.vmem %s0, %s260
        %s262 = smul.u32 2, %s22
        %p263 = scmp.lt.s32.totalorder %s24, 0
        %s264 = scalar_select %p263, %s24, 0
        %s265 = smul.addr %s264, 4
        %s266 = scalar_lea.vmem %s3, %s265
        %p267 = scmp.lt.s32.totalorder %s24, 0
        %s268 = scalar_select %p267, %s24, 0
        %s269 = scalar_lea.vmem %s4, %s268
        %s270 = smul.u32 2, %s22
        %p272 = scmp.eq.s32.totalorder %s23, 0
        %p273 = scmp.eq.s32.totalorder %s24, 0
        %p274 = pnand %p272, %p273
        %p275 = pneg %p274
        // Predicated region
        $region41: #{_lambda_.21} parent=39 // pred_check
          _
        $region42: #{_lambda_.21} parent=39 // pred_check_branch
          %277 = sbr.rel (%p274) target = $region44
        $region43: #{_lambda_.21} parent=39 // pred_region
          %v278 = vld [vmem:[%s261] sm:$0xff]
          %v279 = vld [vmem:[%s261 + $0x8] sm:$0xff]
          %v280 = vld [vmem:[%s1] sm:$0x1]
          %v281 = vld [vmem:[%s2] sm:$0x1]
          %vm282 = vcmask 261120
          %v283 = vsel %vm282, %v278, 0.0
          %284 = vadd.xlane.f32.xlu0 %v283
          %v285 = vpop.xlane.xlu0 %284
          %v286 = vsel %vm282, %v279, 0.0
          %287 = vadd.xlane.f32.xlu0 %v286
          %v288 = vpop.xlane.xlu0 %287
          %v289 = vrcp.pop 32.0
          %v290 = vmul.f32 %v285, %v289
          %v291 = vmul.f32 %v288, %v289
          %v292 = vsub.f32 %v278, %v290
          %v293 = vsub.f32 %v279, %v291
          %v294 = vmul.f32 %v292, %v292
          %v295 = vmul.f32 %v293, %v293
          %v296 = vsel %vm282, %v294, 0.0
          %297 = vadd.xlane.f32.xlu0 %v296
          %v298 = vpop.xlane.xlu0 %297
          %v299 = vsel %vm282, %v295, 0.0
          %300 = vadd.xlane.f32.xlu0 %v299
          %v301 = vpop.xlane.xlu0 %300
          %v302 = vmul.f32 %v298, %v289
          %v303 = vmul.f32 %v301, %v289
          %v304 = vadd.f32 %v302, 1e-05
          %v305 = vadd.f32 %v303, 1e-05
          %v306 = vrsqrt.pop %v304
          %v307 = vrsqrt.pop %v305
          %v308 = vmul.f32 %v292, %v306
          %v309 = vmul.f32 %v293, %v307
          %v311 = vlaneseq
          %v312 = vshrl.u32 %v311, 7
          %v313 = vsub.s32 0, %v312
          %v314 = vrot.slane %v280, %v313
          %v316 = vmul.f32 %v308, %v314
          %v317 = vmul.f32 %v309, %v314
          %v319 = vlaneseq
          %v320 = vshrl.u32 %v319, 7
          %v321 = vsub.s32 0, %v320
          %v322 = vrot.slane %v281, %v321
          %v324 = vadd.f32 %v316, %v322
          %v325 = vadd.f32 %v317, %v322
          %v326 = vpack.c.bf16 %v325, %v324
          %v328 = vunpack.c.l.b16 %v326
          %v329 = vunpack.c.h.b16 %v326
          %v330 = vpack.c.b16 %v328, %v328
          %v331 = vpack.c.b16 %v329, %v329
          %vm334 = vcmask 257024
          %335 = vst.msk [vmem:[#allocation2] sm:$0xf] %vm334, %v330
          %336 = vst.msk [vmem:[#allocation2 + $0x4] sm:$0xf] %vm334, %v331
          %vm337 = vcmask 7168
          %338 = vst.msk [vmem:[#allocation3] sm:$0xff] %vm337, -inf
          %339 = vst.msk [vmem:[#allocation3 + $0x8] sm:$0xff] %vm337, -inf
          %340 = vst.msk [vmem:[#allocation4] sm:$0xff] %vm337, 0.0
          %341 = vst.msk [vmem:[#allocation4 + $0x8] sm:$0xff] %vm337, 0.0
        $region44: #{_lambda_.21} parent=39 // pred_fallthru
          _
        %v342 = vld [vmem:[#allocation2] sm:$0xf]
        %v343 = vld [vmem:[#allocation2 + $0x4] sm:$0xf]
        %v344 = vld [vmem:[%s266] sm:$0xf]
        %v345 = vld [vmem:[%s266 + $0x4] sm:$0xf]
        %v346 = vld [vmem:[%s266 + $0x8] sm:$0xf]
        %v347 = vld [vmem:[%s266 + $0xc] sm:$0xf]
        %v348 = vld [vmem:[%s269] sm:$0x1]
        %v350 = vlaneseq
        %v351 = vshrl.u32 %v350, 7
        %v352 = vsub.s32 0, %v351
        %v353 = vrot.slane %v348, %v352
        %v357 = vunpack.c.l.b16 %v342
        %v358 = vunpack.c.l.b16 %v343
        %v359 = vpack.c.b16 %v358, %v357
        %v364 = vunpack.c.l.b16 %v344
        %v365 = vunpack.c.l.b16 %v345
        %v366 = vunpack.c.l.b16 %v346
        %v367 = vunpack.c.l.b16 %v347
        %v368 = vpack.c.b16 %v365, %v364
        %v369 = vpack.c.b16 %v367, %v366
        %vm372 = vcmask 261120
        %v374 = vsel %vm372, %v359, 0
        %376 = vmatprep.subr.bf16.mxu0 0
        %377 = vmatpush1.bf16.msra.mxu0 0
        %378 = vmatprep.subr.bf16.mxu0 0
        %379 = vmatpush1.bf16.msra.mxu0 0
        %380 = vmatprep.subr.bf16.mxu0 0
        %381 = vmatpush1.bf16.msra.mxu0 0
        %382 = vmatprep.subr.bf16.mxu0 0
        %383 = vmatpush1.bf16.msra.mxu0 0
        %384 = vmatprep.subr.bf16.mxu0 0
        %385 = vmatpush1.bf16.msra.mxu0 0
        %386 = vmatprep.subr.bf16.mxu0 0
        %387 = vmatpush1.bf16.msra.mxu0 0
        %388 = vmatprep.subr.bf16.mxu0 0
        %389 = vmatpush1.bf16.msra.mxu0 %v369
        %390 = vmatprep.subr.bf16.mxu0 0
        %391 = vmatpush1.bf16.msra.mxu0 %v368
        %392 = vmatprep.subr.bf16.mxu0 0
        %393 = vmatpush2.bf16.msra.mxu0 0
        %394 = vmatprep.subr.bf16.mxu0 0
        %395 = vmatpush2.bf16.msra.mxu0 0
        %396 = vmatprep.subr.bf16.mxu0 0
        %397 = vmatpush2.bf16.msra.mxu0 0
        %398 = vmatprep.subr.bf16.mxu0 0
        %399 = vmatpush2.bf16.msra.mxu0 0
        %400 = vmatprep.subr.bf16.mxu0 0
        %401 = vmatpush2.bf16.msra.mxu0 0
        %402 = vmatprep.subr.bf16.mxu0 0
        %403 = vmatpush2.bf16.msra.mxu0 0
        %404 = vmatprep.subr.bf16.mxu0 0
        %405 = vmatpush2.bf16.msra.mxu0 0
        %406 = vmatprep.subr.bf16.mxu0 0
        %407 = vmatpush2.bf16.msra.mxu0 0
        %408 = vmatprep.mubr.bf16.mxu0 0
        %409 = vmatmul.mubr.bf16.gmra.mxu0 %v374
        %v410 = vpop.f32.mrf.mxu0
        %v411 = vadd.f32 %v353, %v410
        %v412 = vpop.f32.mrf.mxu0
        %v413 = vpop.f32.mrf.mxu0
        %v414 = vadd.f32 %v353, %v413
        %v415 = vpop.f32.mrf.mxu0
        %416 = vdwg.mxu0
        // Predicated region
        $region45: #{_lambda_.21} parent=39 // pred_check
          %p417 = pneg %p272
        $region46: #{_lambda_.21} parent=39 // pred_check_branch
          %419 = sbr.rel (%p417) target = $region48
        $region47: #{_lambda_.21} parent=39 // pred_region
          %v420 = vld [vmem:[#allocation3] sm:$0xff]
          %v421 = vld [vmem:[#allocation3 + $0x8] sm:$0xff]
          %v422 = vsel %vm372, %v411, -inf
          %423 = vmax.xlane.f32.xlu0 %v422
          %v424 = vpop.xlane.xlu0 %423
          %v425 = vsel %vm372, %v414, -inf
          %426 = vmax.xlane.f32.xlu0 %v425
          %v427 = vpop.xlane.xlu0 %426
          %v428 = vmax.f32 %v420, %v424
          %v429 = vmax.f32 %v421, %v427
          %v430 = vsub.f32 %v420, %v428
          %v431 = vsub.f32 %v421, %v429
          %v432 = vmul.f32 %v430, 1.442695
          %v433 = vpow.pop %v432
          %v434 = vmul.f32 %v431, 1.442695
          %v435 = vpow.pop %v434
          %437 = vset.pattern.permute.xlu0 0
          %438 = vperm.xlu0 %437, %v428
          %v439 = vpop.permute.xlu0 %438
          %442 = vset.pattern.permute.xlu0 0
          %443 = vperm.xlu0 %442, %v429
          %v444 = vpop.permute.xlu0 %443
          %v446 = vsub.f32 %v411, %v439
          %v447 = vsub.f32 %v414, %v444
          %v448 = vmul.f32 %v446, 1.442695
          %v449 = vpow.pop %v448
          %v450 = vmul.f32 %v447, 1.442695
          %v451 = vpow.pop %v450
          %v452 = vld [vmem:[#allocation4] sm:$0xff]
          %v453 = vld [vmem:[#allocation4 + $0x8] sm:$0xff]
          %v454 = vmul.f32 %v433, %v452
          %v455 = vmul.f32 %v435, %v453
          %v456 = vsel %vm372, %v449, 0.0
          %457 = vadd.xlane.f32.xlu0 %v456
          %v458 = vpop.xlane.xlu0 %457
          %v459 = vsel %vm372, %v451, 0.0
          %460 = vadd.xlane.f32.xlu0 %v459
          %v461 = vpop.xlane.xlu0 %460
          %v462 = vadd.f32 %v454, %v458
          %v463 = vadd.f32 %v455, %v461
          %vm464 = vcmask 7168
          %465 = vst.msk [vmem:[#allocation4] sm:$0xff] %vm464, %v462
          %466 = vst.msk [vmem:[#allocation4 + $0x8] sm:$0xff] %vm464, %v463
          %467 = vst.msk [vmem:[#allocation3] sm:$0xff] %vm464, %v428
          %468 = vst.msk [vmem:[#allocation3 + $0x8] sm:$0xff] %vm464, %v429
          %469 = vst.msk [vmem:[#allocation6] sm:$0xff] %vm372, %v449
          %470 = vst.msk [vmem:[#allocation6 + $0x8] sm:$0xff] %vm372, %v451
        $region48: #{_lambda_.21} parent=39 // pred_fallthru
          _
        %p471 = scmp.eq.s32.totalorder %s23, 1
        %p472 = pnand %p471, %p273
        %p473 = pneg %p472
        // Predicated region
        $region49: #{_lambda_.21} parent=39 // pred_check
          _
        $region50: #{_lambda_.21} parent=39 // pred_check_branch
          %475 = sbr.rel (%p472) target = $region52
        $region51: #{_lambda_.21} parent=39 // pred_region
          %v476 = vld [vmem:[#allocation4] sm:$0xff]
          %v477 = vld [vmem:[#allocation4 + $0x8] sm:$0xff]
          %v478 = vrcp.pop %v476
          %v479 = vmul.f32 1.0, %v478
          %v480 = vrcp.pop %v477
          %v481 = vmul.f32 1.0, %v480
          %vm482 = vcmask 7168
          %483 = vst.msk [vmem:[#allocation5] sm:$0xff] %vm482, %v479
          %484 = vst.msk [vmem:[#allocation5 + $0x8] sm:$0xff] %vm482, %v481
        $region52: #{_lambda_.21} parent=39 // pred_fallthru
          _
        // Predicated region
        $region53: #{_lambda_.21} parent=39 // pred_check
          %p485 = pneg %p471
        $region54: #{_lambda_.21} parent=39 // pred_check_branch
          %487 = sbr.rel (%p485) target = $region56
        $region55: #{_lambda_.21} parent=39 // pred_region
          %v488 = vld [vmem:[#allocation3] sm:$0xff]
          %v489 = vld [vmem:[#allocation3 + $0x8] sm:$0xff]
          %491 = vset.pattern.permute.xlu0 0
          %492 = vperm.xlu0 %491, %v488
          %v493 = vpop.permute.xlu0 %492
          %496 = vset.pattern.permute.xlu0 0
          %497 = vperm.xlu0 %496, %v489
          %v498 = vpop.permute.xlu0 %497
          %v500 = vsub.f32 %v411, %v493
          %v501 = vsub.f32 %v414, %v498
          %v502 = vmul.f32 %v500, 1.442695
          %v503 = vpow.pop %v502
          %v504 = vmul.f32 %v501, 1.442695
          %v505 = vpow.pop %v504
          %v506 = vld [vmem:[#allocation5] sm:$0xff]
          %v507 = vld [vmem:[#allocation5 + $0x8] sm:$0xff]
          %509 = vset.pattern.permute.xlu0 0
          %510 = vperm.xlu0 %509, %v506
          %v511 = vpop.permute.xlu0 %510
          %514 = vset.pattern.permute.xlu0 0
          %515 = vperm.xlu0 %514, %v507
          %v516 = vpop.permute.xlu0 %515
          %v518 = vmul.f32 %v503, %v511
          %v519 = vmul.f32 %v505, %v516
          %520 = vst.msk [vmem:[#allocation6] sm:$0xff] %vm372, %v518
          %521 = vst.msk [vmem:[#allocation6 + $0x8] sm:$0xff] %vm372, %v519
        $region56: #{_lambda_.21} parent=39 // pred_fallthru
          _
        // Predicated region
        $region57: #{_lambda_.21} parent=39 // pred_check
          %p522 = pneg %p176
        $region58: #{_lambda_.21} parent=39 // pred_check_branch
          %524 = sbr.rel (%p522) target = $region60
        $region59: #{_lambda_.21} parent=39 // pred_region
          %s525 = smul.u32 2, %s22
          %s527 = ssub.s32 256, 256
          %528 = vsyncadd [#allocation7], %s527
          %s529 = sadd.s32 %s24, %s525
          %s530 = smul.addr %s529, 128
          %s531 = scalar_lea.hbm %s5, %s530
          %s532 = sshll.u32 [#allocation6], 4
          %s533 = int_to_ptr.vmem [resolvable:$true] %s532
          %538 = dma.vmem_to_hbm [thread:$0]  %s533, 256, %s531, [#allocation7], 128, 128, 8
        $region60: #{_lambda_.21} parent=39 // pred_fallthru
          _
        // Predicated region
        $region61: #{_lambda_.21} parent=39 // pred_check
          %p539 = pneg %p176
        $region62: #{_lambda_.21} parent=39 // pred_check_branch
          %541 = sbr.rel (%p539) target = $region64
        $region63: #{_lambda_.21} parent=39 // pred_region
          %542 = dma.done [#allocation7], 256
        $region64: #{_lambda_.21} parent=39 // pred_fallthru
          _
      $region40: #{_lambda_.21} parent=5 // pred_fallthru
        _
      %p543 = scmp.le.s32.totalorder 2, %s12
      // Predicated region
      $region65: #{_lambda_.21} parent=5 // pred_check
        %p544 = pneg %p543
      $region66: #{_lambda_.21} parent=5 // pred_check_branch
        %546 = sbr.rel (%p544) target = $region68
      $region67: #{_lambda_.21} parent=5 // pred_region
        %s547 = ssub.s32 %s12, 2
      $region68: #{_lambda_.21} parent=5 // pred_fallthru
        _
    $region6: #{_lambda_.21} parent=1 // loop_footer
      %s16 = sadd.s32 1, %s12
    $region7: #{_lambda_.21} parent=1 // loop_footer_branch
      %11 = sbr.rel target = $region3
    $region8: #{_lambda_.21} parent=1 // loop_exit
      _
    %548 = vsyncpa [#allocation7], 1
    %s549 = scalar_lea.sflag [#allocation7], 1
    %550 = vsyncpa %s549, 1

</llo_original>
